<compile_context>
chip_gen: v7x
topology: tpu7x:2x2x1
jax: 0.10.0
libtpu: 0.0.40
codegen_flags: <defaults>
</compile_context>

<pallas_src>
import functools

import jax
import jax.numpy as jnp
from jax.experimental import pallas as pl
from jax.experimental.pallas import tpu as pltpu


# --------------------------------------------------------------------------
# helpers
# --------------------------------------------------------------------------
def _layernorm(x, g, b, eps=1e-12):
    mu = jnp.mean(x, axis=-1, keepdims=True)
    var = jnp.mean(jnp.square(x - mu), axis=-1, keepdims=True)
    return (x - mu) * jax.lax.rsqrt(var + eps) * g + b


# --------------------------------------------------------------------------
# Fused kernel: embeddings + BERT-style encoder layer + max-pool + dense head
# --------------------------------------------------------------------------
def fused_kernel(ids_ref, mask_ref, wemb_ref, pemb_ref, w_in_ref, w_out_ref,
                 vec_ref, o_ref, *, B, S, H, F, D1P, V, OUT_PAD, apply_softmax):
    BS = B * S
    f32, bf16 = jnp.float32, jnp.bfloat16

    # ---- packed bias / LayerNorm rows (each at an 8-sublane-aligned offset) ----
    def vrow(i, w):
        return vec_ref[8 * i:8 * i + 1, 0:w]

    b_qkv = vrow(0, 3 * H)
    b_o   = vrow(1, H)
    ln1_g = vrow(2, H)
    ln1_b = vrow(3, H)
    b_f1  = vrow(4, F)
    b_f2  = vrow(5, H)
    ln2_g = vrow(6, H)
    ln2_b = vrow(7, H)
    b_d1  = vrow(8, D1P)
    b_d2  = vrow(9, OUT_PAD)
    emb_g = vrow(10, H)
    emb_b = vrow(11, H)

    # ---- packed MXU weights (all slice boundaries are multiples of 128/8) ----
    w_qkv = w_in_ref[:, 0:3 * H]                       # (H, 3H)      bf16
    w_o   = w_in_ref[:, 3 * H:4 * H]                   # (H, H)
    w_f1  = w_in_ref[:, 4 * H:4 * H + F]               # (H, F)
    w_d1  = w_in_ref[:, 4 * H + F:4 * H + F + D1P]     # (H, D1P)
    w_f2  = w_out_ref[0:F, :]                          # (F, H)
    w_d2  = w_out_ref[F:F + D1P, :]                    # (D1P, OUT_PAD)

    # ---- embedding gather as a one-hot MXU matmul (no HBM round trip) ----
    ids = ids_ref[...]                                               # (BS, 1) i32
    eq = jax.lax.broadcasted_iota(jnp.int32, (BS, V), 1) == ids      # (BS, V)
    onehot = jnp.where(eq, 1.0, 0.0).astype(bf16)
    x = jnp.dot(onehot, wemb_ref[...], preferred_element_type=f32)   # (BS, H) f32
    x = x + jnp.concatenate([pemb_ref[...]] * B, axis=0)             # + pos emb
    x = _layernorm(x, emb_g, emb_b)
    x_bf = x.astype(bf16)

    # ---- additive attention bias: key padding + cross-batch block-diagonal ----
    key_bias = jnp.where(mask_ref[...] > 0, 0.0, -1e9)               # (1, BS) f32
    qi = jax.lax.broadcasted_iota(jnp.int32, (BS, BS), 0)
    kj = jax.lax.broadcasted_iota(jnp.int32, (BS, BS), 1)
    same_batch = None
    for b in range(B):   # static unroll, tiny B (grid-over-batch at real sizes)
        in_q = (qi >= b * S) & (qi < (b + 1) * S)
        in_k = (kj >= b * S) & (kj < (b + 1) * S)
        blk = in_q & in_k
        same_batch = blk if same_batch is None else (same_batch | blk)
    bias = jnp.where(same_batch, key_bias, -1e9)                     # (BS, BS)

    # ---- fused QKV projection; flat block-diagonal attention (BS x BS) ----
    qkv = jnp.dot(x_bf, w_qkv, preferred_element_type=f32) + b_qkv   # (BS, 3H)
    q = qkv[:, 0:H].astype(bf16)          # 1/sqrt(H) pre-folded into Wq
    k = qkv[:, H:2 * H].astype(bf16)
    v = qkv[:, 2 * H:3 * H].astype(bf16)

    scores = jax.lax.dot_general(q, k, (((1,), (1,)), ((), ())),
                                 preferred_element_type=f32) + bias  # (BS, BS)
    scores = scores - jnp.max(scores, axis=-1, keepdims=True)
    pexp = jnp.exp(scores)
    attn = pexp * pl.reciprocal(jnp.sum(pexp, axis=-1, keepdims=True),
                                approx=True)                         # EUP slot
    ctx = jnp.dot(attn.astype(bf16), v, preferred_element_type=f32)  # (BS, H)

    attn_out = jnp.dot(ctx.astype(bf16), w_o,
                       preferred_element_type=f32) + b_o
    h1 = _layernorm(x + attn_out, ln1_g, ln1_b)

    # ---- FFN ----
    f = jnp.dot(h1.astype(bf16), w_f1, preferred_element_type=f32) + b_f1
    f = jax.nn.gelu(f, approximate=True)
    f = jnp.dot(f.astype(bf16), w_f2, preferred_element_type=f32) + b_f2
    h2 = _layernorm(h1 + f, ln2_g, ln2_b)                            # (BS, H)

    # ---- head: max-pool over seq + Linear(H,D1)+ReLU + Linear(D1,OUT_PAD) ----
    # (matches F.max_pool1d over the full seq, padded positions included, as in
    #  the reference module which does not mask the pooled hidden states)
    pooled = jnp.max(h2.reshape(B, S, H), axis=1)                    # (B, H)
    d1 = jnp.maximum(jnp.dot(pooled.astype(bf16), w_d1,
                             preferred_element_type=f32) + b_d1, 0.0)
    logits = jnp.dot(d1.astype(bf16), w_d2,
                     preferred_element_type=f32) + b_d2              # (B, OUT_PAD)

    if apply_softmax:
        # user-facing softmax: exact divide (approx reciprocal only for attention)
        logits = logits - jnp.max(logits, axis=-1, keepdims=True)
        e = jnp.exp(logits)
        logits = e / jnp.sum(e, axis=-1, keepdims=True)

    o_ref[...] = logits                                              # lane-dense


def run_fused(ids_col, mask_row, p, dims, B, S, softmax):
    H, F, D1P = dims["H"], dims["F"], dims["D1P"]
    OUT_PAD, V = dims["OUT_PAD"], dims["V"]
    kernel = functools.partial(fused_kernel, B=B, S=S, H=H, F=F, D1P=D1P,
                               V=V, OUT_PAD=OUT_PAD, apply_softmax=softmax)

    def full(shape):
        return pl.BlockSpec(shape, lambda: tuple(0 for _ in shape))

    return pl.pallas_call(
        kernel,
        out_shape=jax.ShapeDtypeStruct((B, OUT_PAD), jnp.float32),
        in_specs=[
            full(ids_col.shape),         # token ids        (BS, 1)      int32
            full(mask_row.shape),        # attention mask   (1, BS)      int32
            full(p["word_emb"].shape),   # embedding table  (V, H)       bf16
            full(p["pos_emb"].shape),    # positional emb   (S, H)       f32
            full(p["w_in"].shape),       # packed weights   (H, 4H+F+D1P) bf16
            full(p["w_out"].shape),      # packed weights   (F+D1P, H)   bf16
            full(p["vecs"].shape),       # bias/LN rows     (96, 3H)     f32
        ],
        out_specs=full((B, OUT_PAD)),
        compiler_params=pltpu.CompilerParams(vmem_limit_bytes=32 * 1024 * 1024),
    )(ids_col, mask_row, p["word_emb"], p["pos_emb"],
      p["w_in"], p["w_out"], p["vecs"])


# --------------------------------------------------------------------------
# Parameter construction (deterministic, synthetic)
# --------------------------------------------------------------------------
def make_params(key, vocab=100, seq_len=8, hidden=128, ffn=256,
                dense_hidden=320, out_features=2, out_pad=128, vocab_pad=128):
    H, F = hidden, ffn
    D1P = ((dense_hidden + 127) // 128) * 128          # 320 -> 384 (lane aligned)
    assert vocab <= vocab_pad
    # TODO(synk): w_out packing requires OUT_PAD == H; at real hidden sizes pack
    # w_d2 as a separate operand padded to H columns instead.
    assert out_pad == H, "w_out packing requires OUT_PAD == H"

    ks = jax.random.split(key, 10)
    normal = lambda k, shp, std: std * jax.random.normal(k, shp, jnp.float32)

    inv_sqrt_h = 1.0 / (H ** 0.5)
    wq = normal(ks[0], (H, H), 0.02) * inv_sqrt_h      # attention scale folded in
    wk = normal(ks[1], (H, H), 0.02)
    wv = normal(ks[2], (H, H), 0.02)
    wo = normal(ks[3], (H, H), 0.02)
    w_f1 = normal(ks[4], (H, F), 0.02)
    w_f2 = normal(ks[5], (F, H), 0.02)
    # dense head: kaiming_normal_ (fan_in) as in the module __init__
    w_d1 = normal(ks[6], (H, dense_hidden), (2.0 / H) ** 0.5)
    w_d2 = normal(ks[7], (dense_hidden, out_features), (2.0 / dense_hidden) ** 0.5)
    w_d1p = jnp.zeros((H, D1P), jnp.float32).at[:, :dense_hidden].set(w_d1)
    w_d2p = jnp.zeros((D1P, out_pad), jnp.float32).at[:dense_hidden,
                                                      :out_features].set(w_d2)

    # packed MXU weights, bf16 in HBM (half the DMA bytes, bf16 MXU rate)
    w_in = jnp.concatenate([wq, wk, wv, wo, w_f1, w_d1p],
                           axis=1).astype(jnp.bfloat16)        # (H, 4H+F+D1P)
    w_out = jnp.concatenate([w_f2, w_d2p], axis=0).astype(jnp.bfloat16)

    # bias / LayerNorm vectors: one per 8-row stripe (sublane-aligned reads)
    VW = 3 * H
    zeros_h = jnp.zeros((H,), jnp.float32)
    ones_h = jnp.ones((H,), jnp.float32)
    b_qkv = jnp.zeros((3 * H,), jnp.float32)   # q-part would also carry 1/sqrt(H)
    b_f1 = jnp.zeros((F,), jnp.float32)
    b_d1 = jnp.zeros((D1P,), jnp.float32)
    # padded logit lanes (>= out_features) carry -1e9 so softmax ignores them
    b_d2 = jnp.full((out_pad,), -1e9, jnp.float32).at[:out_features].set(0.0)
    vec_list = [b_qkv, zeros_h, ones_h, zeros_h,    # b_qkv, b_o, ln1_g, ln1_b
                b_f1, zeros_h, ones_h, zeros_h,     # b_f1, b_f2, ln2_g, ln2_b
                b_d1, b_d2, ones_h, zeros_h]        # b_d1, b_d2, emb_ln_g, emb_ln_b
    vecs = jnp.zeros((8 * len(vec_list), VW), jnp.float32)
    for i, v in enumerate(vec_list):
        vecs = vecs.at[8 * i, :v.shape[0]].set(v)

    word_emb = jnp.zeros((vocab_pad, H), jnp.float32)
    word_emb = word_emb.at[:vocab, :].set(normal(ks[8], (vocab, H), 0.02))

    params = {
        "word_emb": word_emb.astype(jnp.bfloat16),   # bf16 table
        "pos_emb": normal(ks[9], (seq_len, H), 0.02),
        "w_in": w_in,
        "w_out": w_out,
        "vecs": vecs,
    }
    dims = {"H": H, "F": F, "D1P": D1P, "OUT": out_features,
            "OUT_PAD": out_pad, "S": seq_len, "V": vocab_pad}
    return params, dims


# --------------------------------------------------------------------------
# Full forward
# --------------------------------------------------------------------------
def sentiment_forward(input_ids, attention_mask, params, dims, softmax=False):
    B, S = input_ids.shape
    # only trivially-small index reshapes stay outside the kernel
    ids_col = input_ids.reshape(B * S, 1).astype(jnp.int32)
    mask_row = attention_mask.reshape(1, B * S).astype(jnp.int32)
    out_pad = run_fused(ids_col, mask_row, params, dims, B, S, softmax)
    return out_pad[:, :dims["OUT"]]                                   # (B, OUT)


if __name__ == "__main__":
    B, S, H, OUT, VOCAB = 2, 8, 128, 2, 100

    key = jax.random.PRNGKey(0)
    k_param, k_ids = jax.random.split(key)
    params, dims = make_params(k_param, vocab=VOCAB, seq_len=S, hidden=H,
                               ffn=2 * H, dense_hidden=320, out_features=OUT)

    input_ids = jax.random.randint(k_ids, (B, S), 0, VOCAB, dtype=jnp.int32)
    attention_mask = jnp.ones((B, S), jnp.int32).at[1, 6:].set(0)   # pad tail of ex 1

    logits = sentiment_forward(input_ids, attention_mask, params, dims, softmax=False)
    probs = sentiment_forward(input_ids, attention_mask, params, dims, softmax=True)
    jax.block_until_ready((logits, probs))

    assert logits.shape == (B, OUT) and probs.shape == (B, OUT)
    assert bool(jnp.all(jnp.isfinite(logits))) and bool(jnp.all(jnp.isfinite(probs)))
    assert bool(jnp.allclose(jnp.sum(probs, axis=-1), 1.0, atol=1e-3))
    print("KERNEL_OK")
</pallas_src>

<mosaic_0001>
module attributes {stable_mosaic.version = 11 : i64} {
  func.func @fused_kernel(%arg0: memref<16x1xi32, #tpu.memory_space<vmem>>, %arg1: memref<1x16xi32, #tpu.memory_space<vmem>>, %arg2: memref<128x128xbf16, #tpu.memory_space<vmem>>, %arg3: memref<8x128xf32, #tpu.memory_space<vmem>>, %arg4: memref<128x1152xbf16, #tpu.memory_space<vmem>>, %arg5: memref<640x128xbf16, #tpu.memory_space<vmem>>, %arg6: memref<96x384xf32, #tpu.memory_space<vmem>>, %arg7: memref<2x128xf32, #tpu.memory_space<vmem>>) attributes {dimension_semantics = [], scalar_prefetch = 0 : i64, scratch_operands = 0 : i64, tpu.core_type = #tpu.core_type<tc>} {
    %c0 = arith.constant 0 : index
    %c0_0 = arith.constant 0 : index
    %0 = vector.load %arg6[%c0, %c0_0] : memref<96x384xf32, #tpu.memory_space<vmem>>, vector<1x384xf32>
    %c8 = arith.constant 8 : index
    %c0_1 = arith.constant 0 : index
    %1 = vector.load %arg6[%c8, %c0_1] : memref<96x384xf32, #tpu.memory_space<vmem>>, vector<1x128xf32>
    %c16 = arith.constant 16 : index
    %c0_2 = arith.constant 0 : index
    %2 = vector.load %arg6[%c16, %c0_2] : memref<96x384xf32, #tpu.memory_space<vmem>>, vector<1x128xf32>
    %c24 = arith.constant 24 : index
    %c0_3 = arith.constant 0 : index
    %3 = vector.load %arg6[%c24, %c0_3] : memref<96x384xf32, #tpu.memory_space<vmem>>, vector<1x128xf32>
    %c32 = arith.constant 32 : index
    %c0_4 = arith.constant 0 : index
    %4 = vector.load %arg6[%c32, %c0_4] : memref<96x384xf32, #tpu.memory_space<vmem>>, vector<1x256xf32>
    %c40 = arith.constant 40 : index
    %c0_5 = arith.constant 0 : index
    %5 = vector.load %arg6[%c40, %c0_5] : memref<96x384xf32, #tpu.memory_space<vmem>>, vector<1x128xf32>
    %c48 = arith.constant 48 : index
    %c0_6 = arith.constant 0 : index
    %6 = vector.load %arg6[%c48, %c0_6] : memref<96x384xf32, #tpu.memory_space<vmem>>, vector<1x128xf32>
    %c56 = arith.constant 56 : index
    %c0_7 = arith.constant 0 : index
    %7 = vector.load %arg6[%c56, %c0_7] : memref<96x384xf32, #tpu.memory_space<vmem>>, vector<1x128xf32>
    %c64 = arith.constant 64 : index
    %c0_8 = arith.constant 0 : index
    %8 = vector.load %arg6[%c64, %c0_8] : memref<96x384xf32, #tpu.memory_space<vmem>>, vector<1x384xf32>
    %c72 = arith.constant 72 : index
    %c0_9 = arith.constant 0 : index
    %9 = vector.load %arg6[%c72, %c0_9] : memref<96x384xf32, #tpu.memory_space<vmem>>, vector<1x128xf32>
    %c80 = arith.constant 80 : index
    %c0_10 = arith.constant 0 : index
    %10 = vector.load %arg6[%c80, %c0_10] : memref<96x384xf32, #tpu.memory_space<vmem>>, vector<1x128xf32>
    %c88 = arith.constant 88 : index
    %c0_11 = arith.constant 0 : index
    %11 = vector.load %arg6[%c88, %c0_11] : memref<96x384xf32, #tpu.memory_space<vmem>>, vector<1x128xf32>
    %c0_12 = arith.constant 0 : index
    %c0_13 = arith.constant 0 : index
    %12 = vector.load %arg4[%c0_12, %c0_13] : memref<128x1152xbf16, #tpu.memory_space<vmem>>, vector<128x384xbf16>
    %c0_14 = arith.constant 0 : index
    %c384 = arith.constant 384 : index
    %13 = vector.load %arg4[%c0_14, %c384] : memref<128x1152xbf16, #tpu.memory_space<vmem>>, vector<128x128xbf16>
    %c0_15 = arith.constant 0 : index
    %c512 = arith.constant 512 : index
    %14 = vector.load %arg4[%c0_15, %c512] : memref<128x1152xbf16, #tpu.memory_space<vmem>>, vector<128x256xbf16>
    %c0_16 = arith.constant 0 : index
    %c768 = arith.constant 768 : index
    %15 = vector.load %arg4[%c0_16, %c768] : memref<128x1152xbf16, #tpu.memory_space<vmem>>, vector<128x384xbf16>
    %c0_17 = arith.constant 0 : index
    %c0_18 = arith.constant 0 : index
    %16 = vector.load %arg5[%c0_17, %c0_18] : memref<640x128xbf16, #tpu.memory_space<vmem>>, vector<256x128xbf16>
    %c256 = arith.constant 256 : index
    %c0_19 = arith.constant 0 : index
    %17 = vector.load %arg5[%c256, %c0_19] : memref<640x128xbf16, #tpu.memory_space<vmem>>, vector<384x128xbf16>
    %c0_20 = arith.constant 0 : index
    %c0_21 = arith.constant 0 : index
    %18 = vector.load %arg0[%c0_20, %c0_21] : memref<16x1xi32, #tpu.memory_space<vmem>>, vector<16x1xi32>
    %19 = tpu.iota {dimensions = array<i32: 1>} : vector<16x128xi32>
    %20 = vector.broadcast %18 : vector<16x1xi32> to vector<16x128xi32>
    %21 = arith.cmpi eq, %19, %20 : vector<16x128xi32>
    %cst = arith.constant 1.000000e+00 : f32
    %cst_22 = arith.constant 0.000000e+00 : f32
    %22 = vector.broadcast %cst : f32 to vector<16x128xf32>
    %23 = vector.broadcast %cst_22 : f32 to vector<16x128xf32>
    %24 = arith.select %21, %22, %23 : vector<16x128xi1>, vector<16x128xf32>
    %25 = arith.truncf %24 : vector<16x128xf32> to vector<16x128xbf16>
    %c0_23 = arith.constant 0 : index
    %c0_24 = arith.constant 0 : index
    %26 = vector.load %arg2[%c0_23, %c0_24] : memref<128x128xbf16, #tpu.memory_space<vmem>>, vector<128x128xbf16>
    %cst_25 = arith.constant dense<0.000000e+00> : vector<16x128xf32>
    %27 = tpu.matmul %25, %26, %cst_25 {dimension_numbers = #tpu.dot_dimension_numbers<[1], [0], [0], [1], [0, 0, 1, 1], [], []>} : vector<16x128xbf16>, vector<128x128xbf16>, vector<16x128xf32> -> vector<16x128xf32>
    %c0_26 = arith.constant 0 : index
    %c0_27 = arith.constant 0 : index
    %28 = vector.load %arg3[%c0_26, %c0_27] : memref<8x128xf32, #tpu.memory_space<vmem>>, vector<8x128xf32>
    %29 = tpu.concatenate %28, %28 in 0 : vector<8x128xf32>, vector<8x128xf32> -> vector<16x128xf32>
    %30 = arith.addf %27, %29 : vector<16x128xf32>
    %cst_28 = arith.constant dense<0.000000e+00> : vector<16xf32>
    %31 = vector.multi_reduction <add>, %30, %cst_28 [1] : vector<16x128xf32> to vector<16xf32>
    %32 = vector.shape_cast %31 : vector<16xf32> to vector<16x1xf32>
    %cst_29 = arith.constant 1.280000e+02 : f32
    %33 = vector.broadcast %cst_29 : f32 to vector<16x1xf32>
    %34 = arith.divf %32, %33 : vector<16x1xf32>
    %35 = vector.broadcast %34 : vector<16x1xf32> to vector<16x128xf32>
    %36 = arith.subf %30, %35 : vector<16x128xf32>
    %37 = arith.mulf %36, %36 : vector<16x128xf32>
    %cst_30 = arith.constant dense<0.000000e+00> : vector<16xf32>
    %38 = vector.multi_reduction <add>, %37, %cst_30 [1] : vector<16x128xf32> to vector<16xf32>
    %39 = vector.shape_cast %38 : vector<16xf32> to vector<16x1xf32>
    %cst_31 = arith.constant 1.280000e+02 : f32
    %40 = vector.broadcast %cst_31 : f32 to vector<16x1xf32>
    %41 = arith.divf %39, %40 : vector<16x1xf32>
    %42 = vector.broadcast %34 : vector<16x1xf32> to vector<16x128xf32>
    %43 = arith.subf %30, %42 : vector<16x128xf32>
    %cst_32 = arith.constant 9.99999996E-13 : f32
    %44 = vector.broadcast %cst_32 : f32 to vector<16x1xf32>
    %45 = arith.addf %41, %44 : vector<16x1xf32>
    %46 = math.rsqrt %45 : vector<16x1xf32>
    %47 = vector.broadcast %46 : vector<16x1xf32> to vector<16x128xf32>
    %48 = arith.mulf %43, %47 : vector<16x128xf32>
    %49 = vector.broadcast %10 : vector<1x128xf32> to vector<16x128xf32>
    %50 = arith.mulf %48, %49 : vector<16x128xf32>
    %51 = vector.broadcast %11 : vector<1x128xf32> to vector<16x128xf32>
    %52 = arith.addf %50, %51 : vector<16x128xf32>
    %53 = arith.truncf %52 : vector<16x128xf32> to vector<16x128xbf16>
    %c0_33 = arith.constant 0 : index
    %c0_34 = arith.constant 0 : index
    %54 = vector.load %arg1[%c0_33, %c0_34] : memref<1x16xi32, #tpu.memory_space<vmem>>, vector<1x16xi32>
    %c0_i32 = arith.constant 0 : i32
    %55 = vector.broadcast %c0_i32 : i32 to vector<1x16xi32>
    %56 = arith.cmpi sgt, %54, %55 : vector<1x16xi32>
    %cst_35 = arith.constant 0.000000e+00 : f32
    %cst_36 = arith.constant -1.000000e+09 : f32
    %57 = vector.broadcast %cst_35 : f32 to vector<1x16xf32>
    %58 = vector.broadcast %cst_36 : f32 to vector<1x16xf32>
    %59 = arith.select %56, %57, %58 : vector<1x16xi1>, vector<1x16xf32>
    %60 = tpu.iota {dimensions = array<i32: 0>} : vector<16x16xi32>
    %61 = tpu.iota {dimensions = array<i32: 1>} : vector<16x16xi32>
    %c0_i32_37 = arith.constant 0 : i32
    %62 = vector.broadcast %c0_i32_37 : i32 to vector<16x16xi32>
    %63 = arith.cmpi sge, %60, %62 : vector<16x16xi32>
    %c8_i32 = arith.constant 8 : i32
    %64 = vector.broadcast %c8_i32 : i32 to vector<16x16xi32>
    %65 = arith.cmpi slt, %60, %64 : vector<16x16xi32>
    %66 = arith.andi %63, %65 : vector<16x16xi1>
    %c0_i32_38 = arith.constant 0 : i32
    %67 = vector.broadcast %c0_i32_38 : i32 to vector<16x16xi32>
    %68 = arith.cmpi sge, %61, %67 : vector<16x16xi32>
    %c8_i32_39 = arith.constant 8 : i32
    %69 = vector.broadcast %c8_i32_39 : i32 to vector<16x16xi32>
    %70 = arith.cmpi slt, %61, %69 : vector<16x16xi32>
    %71 = arith.andi %68, %70 : vector<16x16xi1>
    %72 = arith.andi %66, %71 : vector<16x16xi1>
    %c8_i32_40 = arith.constant 8 : i32
    %73 = vector.broadcast %c8_i32_40 : i32 to vector<16x16xi32>
    %74 = arith.cmpi sge, %60, %73 : vector<16x16xi32>
    %c16_i32 = arith.constant 16 : i32
    %75 = vector.broadcast %c16_i32 : i32 to vector<16x16xi32>
    %76 = arith.cmpi slt, %60, %75 : vector<16x16xi32>
    %77 = arith.andi %74, %76 : vector<16x16xi1>
    %c8_i32_41 = arith.constant 8 : i32
    %78 = vector.broadcast %c8_i32_41 : i32 to vector<16x16xi32>
    %79 = arith.cmpi sge, %61, %78 : vector<16x16xi32>
    %c16_i32_42 = arith.constant 16 : i32
    %80 = vector.broadcast %c16_i32_42 : i32 to vector<16x16xi32>
    %81 = arith.cmpi slt, %61, %80 : vector<16x16xi32>
    %82 = arith.andi %79, %81 : vector<16x16xi1>
    %83 = arith.andi %77, %82 : vector<16x16xi1>
    %84 = arith.ori %72, %83 : vector<16x16xi1>
    %cst_43 = arith.constant -1.000000e+09 : f32
    %85 = vector.shape_cast %59 : vector<1x16xf32> to vector<1x16xf32>
    %86 = vector.broadcast %85 : vector<1x16xf32> to vector<16x16xf32>
    %87 = vector.broadcast %cst_43 : f32 to vector<16x16xf32>
    %88 = arith.select %84, %86, %87 : vector<16x16xi1>, vector<16x16xf32>
    %cst_44 = arith.constant dense<0.000000e+00> : vector<16x384xf32>
    %89 = tpu.matmul %53, %12, %cst_44 {dimension_numbers = #tpu.dot_dimension_numbers<[1], [0], [0], [1], [0, 0, 1, 1], [], []>} : vector<16x128xbf16>, vector<128x384xbf16>, vector<16x384xf32> -> vector<16x384xf32>
    %90 = vector.broadcast %0 : vector<1x384xf32> to vector<16x384xf32>
    %91 = arith.addf %89, %90 : vector<16x384xf32>
    %92 = vector.extract_strided_slice %91 {offsets = [0, 0], sizes = [16, 128], strides = [1, 1]} : vector<16x384xf32> to vector<16x128xf32>
    %93 = arith.truncf %92 : vector<16x128xf32> to vector<16x128xbf16>
    %94 = vector.extract_strided_slice %91 {offsets = [0, 128], sizes = [16, 128], strides = [1, 1]} : vector<16x384xf32> to vector<16x128xf32>
    %95 = arith.truncf %94 : vector<16x128xf32> to vector<16x128xbf16>
    %96 = vector.extract_strided_slice %91 {offsets = [0, 256], sizes = [16, 128], strides = [1, 1]} : vector<16x384xf32> to vector<16x128xf32>
    %97 = arith.truncf %96 : vector<16x128xf32> to vector<16x128xbf16>
    %cst_45 = arith.constant dense<0.000000e+00> : vector<16x16xf32>
    %98 = tpu.matmul %93, %95, %cst_45 {dimension_numbers = #tpu.dot_dimension_numbers<[1], [1], [0], [0], [0, 0, 1, 0], [], []>} : vector<16x128xbf16>, vector<16x128xbf16>, vector<16x16xf32> -> vector<16x16xf32>
    %99 = arith.addf %98, %88 : vector<16x16xf32>
    %cst_46 = arith.constant dense<0xFF800000> : vector<16xf32>
    %100 = vector.multi_reduction <maximumf>, %99, %cst_46 [1] : vector<16x16xf32> to vector<16xf32>
    %101 = vector.shape_cast %100 : vector<16xf32> to vector<16x1xf32>
    %102 = vector.broadcast %101 : vector<16x1xf32> to vector<16x16xf32>
    %103 = arith.subf %99, %102 : vector<16x16xf32>
    %104 = math.exp %103 : vector<16x16xf32>
    %cst_47 = arith.constant dense<0.000000e+00> : vector<16xf32>
    %105 = vector.multi_reduction <add>, %104, %cst_47 [1] : vector<16x16xf32> to vector<16xf32>
    %106 = vector.shape_cast %105 : vector<16xf32> to vector<16x1xf32>
    %107 = tpu.reciprocal %106 {approx = true} : vector<16x1xf32> -> vector<16x1xf32>
    %108 = vector.broadcast %107 : vector<16x1xf32> to vector<16x16xf32>
    %109 = arith.mulf %104, %108 : vector<16x16xf32>
    %110 = arith.truncf %109 : vector<16x16xf32> to vector<16x16xbf16>
    %cst_48 = arith.constant dense<0.000000e+00> : vector<16x128xf32>
    %111 = tpu.matmul %110, %97, %cst_48 {dimension_numbers = #tpu.dot_dimension_numbers<[1], [0], [0], [1], [0, 0, 1, 1], [], []>} : vector<16x16xbf16>, vector<16x128xbf16>, vector<16x128xf32> -> vector<16x128xf32>
    %112 = arith.truncf %111 : vector<16x128xf32> to vector<16x128xbf16>
    %cst_49 = arith.constant dense<0.000000e+00> : vector<16x128xf32>
    %113 = tpu.matmul %112, %13, %cst_49 {dimension_numbers = #tpu.dot_dimension_numbers<[1], [0], [0], [1], [0, 0, 1, 1], [], []>} : vector<16x128xbf16>, vector<128x128xbf16>, vector<16x128xf32> -> vector<16x128xf32>
    %114 = vector.broadcast %1 : vector<1x128xf32> to vector<16x128xf32>
    %115 = arith.addf %113, %114 : vector<16x128xf32>
    %116 = arith.addf %52, %115 : vector<16x128xf32>
    %cst_50 = arith.constant dense<0.000000e+00> : vector<16xf32>
    %117 = vector.multi_reduction <add>, %116, %cst_50 [1] : vector<16x128xf32> to vector<16xf32>
    %118 = vector.shape_cast %117 : vector<16xf32> to vector<16x1xf32>
    %cst_51 = arith.constant 1.280000e+02 : f32
    %119 = vector.broadcast %cst_51 : f32 to vector<16x1xf32>
    %120 = arith.divf %118, %119 : vector<16x1xf32>
    %121 = vector.broadcast %120 : vector<16x1xf32> to vector<16x128xf32>
    %122 = arith.subf %116, %121 : vector<16x128xf32>
    %123 = arith.mulf %122, %122 : vector<16x128xf32>
    %cst_52 = arith.constant dense<0.000000e+00> : vector<16xf32>
    %124 = vector.multi_reduction <add>, %123, %cst_52 [1] : vector<16x128xf32> to vector<16xf32>
    %125 = vector.shape_cast %124 : vector<16xf32> to vector<16x1xf32>
    %cst_53 = arith.constant 1.280000e+02 : f32
    %126 = vector.broadcast %cst_53 : f32 to vector<16x1xf32>
    %127 = arith.divf %125, %126 : vector<16x1xf32>
    %128 = vector.broadcast %120 : vector<16x1xf32> to vector<16x128xf32>
    %129 = arith.subf %116, %128 : vector<16x128xf32>
    %cst_54 = arith.constant 9.99999996E-13 : f32
    %130 = vector.broadcast %cst_54 : f32 to vector<16x1xf32>
    %131 = arith.addf %127, %130 : vector<16x1xf32>
    %132 = math.rsqrt %131 : vector<16x1xf32>
    %133 = vector.broadcast %132 : vector<16x1xf32> to vector<16x128xf32>
    %134 = arith.mulf %129, %133 : vector<16x128xf32>
    %135 = vector.broadcast %2 : vector<1x128xf32> to vector<16x128xf32>
    %136 = arith.mulf %134, %135 : vector<16x128xf32>
    %137 = vector.broadcast %3 : vector<1x128xf32> to vector<16x128xf32>
    %138 = arith.addf %136, %137 : vector<16x128xf32>
    %139 = arith.truncf %138 : vector<16x128xf32> to vector<16x128xbf16>
    %cst_55 = arith.constant dense<0.000000e+00> : vector<16x256xf32>
    %140 = tpu.matmul %139, %14, %cst_55 {dimension_numbers = #tpu.dot_dimension_numbers<[1], [0], [0], [1], [0, 0, 1, 1], [], []>} : vector<16x128xbf16>, vector<128x256xbf16>, vector<16x256xf32> -> vector<16x256xf32>
    %141 = vector.broadcast %4 : vector<1x256xf32> to vector<16x256xf32>
    %142 = arith.addf %140, %141 : vector<16x256xf32>
    %143 = arith.mulf %142, %142 : vector<16x256xf32>
    %144 = arith.mulf %142, %143 : vector<16x256xf32>
    %cst_56 = arith.constant 4.471500e-02 : f32
    %145 = vector.broadcast %cst_56 : f32 to vector<16x256xf32>
    %146 = arith.mulf %145, %144 : vector<16x256xf32>
    %147 = arith.addf %142, %146 : vector<16x256xf32>
    %cst_57 = arith.constant 0.797884583 : f32
    %148 = vector.broadcast %cst_57 : f32 to vector<16x256xf32>
    %149 = arith.mulf %148, %147 : vector<16x256xf32>
    %150 = math.tanh %149 : vector<16x256xf32>
    %cst_58 = arith.constant 1.000000e+00 : f32
    %151 = vector.broadcast %cst_58 : f32 to vector<16x256xf32>
    %152 = arith.addf %151, %150 : vector<16x256xf32>
    %cst_59 = arith.constant 5.000000e-01 : f32
    %153 = vector.broadcast %cst_59 : f32 to vector<16x256xf32>
    %154 = arith.mulf %153, %152 : vector<16x256xf32>
    %155 = arith.mulf %142, %154 : vector<16x256xf32>
    %156 = arith.truncf %155 : vector<16x256xf32> to vector<16x256xbf16>
    %cst_60 = arith.constant dense<0.000000e+00> : vector<16x128xf32>
    %157 = tpu.matmul %156, %16, %cst_60 {dimension_numbers = #tpu.dot_dimension_numbers<[1], [0], [0], [1], [0, 0, 1, 1], [], []>} : vector<16x256xbf16>, vector<256x128xbf16>, vector<16x128xf32> -> vector<16x128xf32>
    %158 = vector.broadcast %5 : vector<1x128xf32> to vector<16x128xf32>
    %159 = arith.addf %157, %158 : vector<16x128xf32>
    %160 = arith.addf %138, %159 : vector<16x128xf32>
    %cst_61 = arith.constant dense<0.000000e+00> : vector<16xf32>
    %161 = vector.multi_reduction <add>, %160, %cst_61 [1] : vector<16x128xf32> to vector<16xf32>
    %162 = vector.shape_cast %161 : vector<16xf32> to vector<16x1xf32>
    %cst_62 = arith.constant 1.280000e+02 : f32
    %163 = vector.broadcast %cst_62 : f32 to vector<16x1xf32>
    %164 = arith.divf %162, %163 : vector<16x1xf32>
    %165 = vector.broadcast %164 : vector<16x1xf32> to vector<16x128xf32>
    %166 = arith.subf %160, %165 : vector<16x128xf32>
    %167 = arith.mulf %166, %166 : vector<16x128xf32>
    %cst_63 = arith.constant dense<0.000000e+00> : vector<16xf32>
    %168 = vector.multi_reduction <add>, %167, %cst_63 [1] : vector<16x128xf32> to vector<16xf32>
    %169 = vector.shape_cast %168 : vector<16xf32> to vector<16x1xf32>
    %cst_64 = arith.constant 1.280000e+02 : f32
    %170 = vector.broadcast %cst_64 : f32 to vector<16x1xf32>
    %171 = arith.divf %169, %170 : vector<16x1xf32>
    %172 = vector.broadcast %164 : vector<16x1xf32> to vector<16x128xf32>
    %173 = arith.subf %160, %172 : vector<16x128xf32>
    %cst_65 = arith.constant 9.99999996E-13 : f32
    %174 = vector.broadcast %cst_65 : f32 to vector<16x1xf32>
    %175 = arith.addf %171, %174 : vector<16x1xf32>
    %176 = math.rsqrt %175 : vector<16x1xf32>
    %177 = vector.broadcast %176 : vector<16x1xf32> to vector<16x128xf32>
    %178 = arith.mulf %173, %177 : vector<16x128xf32>
    %179 = vector.broadcast %6 : vector<1x128xf32> to vector<16x128xf32>
    %180 = arith.mulf %178, %179 : vector<16x128xf32>
    %181 = vector.broadcast %7 : vector<1x128xf32> to vector<16x128xf32>
    %182 = arith.addf %180, %181 : vector<16x128xf32>
    %183 = vector.shape_cast %182 : vector<16x128xf32> to vector<2x8x128xf32>
    %cst_66 = arith.constant dense<0xFF800000> : vector<2x128xf32>
    %184 = vector.multi_reduction <maximumf>, %183, %cst_66 [1] : vector<2x8x128xf32> to vector<2x128xf32>
    %185 = arith.truncf %184 : vector<2x128xf32> to vector<2x128xbf16>
    %cst_67 = arith.constant dense<0.000000e+00> : vector<2x384xf32>
    %186 = tpu.matmul %185, %15, %cst_67 {dimension_numbers = #tpu.dot_dimension_numbers<[1], [0], [0], [1], [0, 0, 1, 1], [], []>} : vector<2x128xbf16>, vector<128x384xbf16>, vector<2x384xf32> -> vector<2x384xf32>
    %187 = vector.broadcast %8 : vector<1x384xf32> to vector<2x384xf32>
    %188 = arith.addf %186, %187 : vector<2x384xf32>
    %cst_68 = arith.constant 0.000000e+00 : f32
    %189 = vector.broadcast %cst_68 : f32 to vector<2x384xf32>
    %190 = arith.maximumf %188, %189 : vector<2x384xf32>
    %191 = arith.truncf %190 : vector<2x384xf32> to vector<2x384xbf16>
    %cst_69 = arith.constant dense<0.000000e+00> : vector<2x128xf32>
    %192 = tpu.matmul %191, %17, %cst_69 {dimension_numbers = #tpu.dot_dimension_numbers<[1], [0], [0], [1], [0, 0, 1, 1], [], []>} : vector<2x384xbf16>, vector<384x128xbf16>, vector<2x128xf32> -> vector<2x128xf32>
    %193 = vector.broadcast %9 : vector<1x128xf32> to vector<2x128xf32>
    %194 = arith.addf %192, %193 : vector<2x128xf32>
    %c0_70 = arith.constant 0 : index
    %c0_71 = arith.constant 0 : index
    %195 = vector.load %arg7[%c0_70, %c0_71] : memref<2x128xf32, #tpu.memory_space<vmem>>, vector<2x128xf32>
    tpu.vector_store %arg7[%c0_70, %c0_71], %194 {strides = array<i32>} : memref<2x128xf32, #tpu.memory_space<vmem>>, vector<2x128xf32>,
    return
  }
}

</mosaic_0001>

<llo_original>
// kernel: tpu_custom_call.1
$region0: #{tpu_custom_call.1}
  #allocation0 [shape = 'u32[]', space=smem, size = 0x4, offset = 0x4, fixed_abs, tag = 'smem constant byte address 0x4 - core index']
  #allocation1 [shape = 'u32[144,128]{1,0:T(1,128)}', space=vmem, size = 0x12000, scoped, tag = 'internal scratch']
  %s0 = inlined_call_operand.vmem [shape: s32[16,1], index: 0, kind: input, shape index: {}]
  %s1 = inlined_call_operand.vmem [shape: s32[1,16], index: 1, kind: input, shape index: {}]
  %s2 = inlined_call_operand.hbm [shape: bf16[128,128], index: 2, kind: input, shape index: {}]
  %s3 = inlined_call_operand.vmem [shape: f32[8,128], index: 3, kind: input, shape index: {}]
  %s4 = inlined_call_operand.hbm [shape: bf16[128,1152], index: 4, kind: input, shape index: {}]
  %s5 = inlined_call_operand.hbm [shape: bf16[640,128], index: 5, kind: input, shape index: {}]
  %s6 = inlined_call_operand.hbm [shape: f32[96,384], index: 6, kind: input, shape index: {}]
  %s7 = inlined_call_operand.hbm [shape: f32[2,128], index: 7, kind: output, shape index: {}]
  %s8 = sld [smem:[#allocation0]]
  $region54: #{tpu_custom_call.1} parent=0
    _
  %s10 = ssub.s32 1, %s8
  %s11 = scalar_select 0, %s10, %s8
  $region1: #{tpu_custom_call.1} parent=0
    #allocation2 [shape = 'u8[32768]{0}', space=vmem, size = 0x8000, scoped, tag = 'input window, operand 2, single buffered']
    #allocation3 [shape = 's32[1]{0}', space=sflag, size = 0x4, scoped, tag = 'scoped memory for tpu_custom_call.1']
    #allocation4 [shape = 's32[1]{0}', space=sflag, size = 0x4, scoped, tag = 'scoped memory for tpu_custom_call.1']
    #allocation5 [shape = 'u8[294912]{0}', space=vmem, size = 0x48000, scoped, tag = 'input window, operand 4, single buffered']
    #allocation6 [shape = 's32[1]{0}', space=sflag, size = 0x4, scoped, tag = 'scoped memory for tpu_custom_call.1']
    #allocation7 [shape = 'u8[163840]{0}', space=vmem, size = 0x28000, scoped, tag = 'input window, operand 5, single buffered']
    #allocation8 [shape = 'u8[147456]{0}', space=vmem, size = 0x24000, scoped, tag = 'input window, operand 6, single buffered']
    #allocation9 [shape = 's32[1]{0}', space=sflag, size = 0x4, scoped, tag = 'scoped memory for tpu_custom_call.1']
    #allocation10 [shape = 'u8[1024]{0}', space=vmem, size = 0x400, scoped, tag = 'output window, operand 0, single buffered']
    %12 = vsyncpa [#allocation3], 0
    %13 = vsyncpa [#allocation6], 0
    %14 = vsyncpa [#allocation9], 0
    %15 = vsyncpa [#allocation4], 0
    // Predicated region
    $region2: #{tpu_custom_call.1} parent=1 // pred_check
      _
    $region3: #{tpu_custom_call.1} parent=1 // pred_check_branch
      %17 = sbr.rel (0) target = $region5
    $region4: #{tpu_custom_call.1} parent=1 // pred_region
      _
    $region5: #{tpu_custom_call.1} parent=1 // pred_fallthru
      _
    // Predicated region
    $region6: #{tpu_custom_call.1} parent=1 // pred_check
      _
    $region7: #{tpu_custom_call.1} parent=1 // pred_check_branch
      %19 = sbr.rel (0) target = $region9
    $region8: #{tpu_custom_call.1} parent=1 // pred_region
      _
    $region9: #{tpu_custom_call.1} parent=1 // pred_fallthru
      _
    // Predicated region
    $region10: #{tpu_custom_call.1} parent=1 // pred_check
      _
    $region11: #{tpu_custom_call.1} parent=1 // pred_check_branch
      %21 = sbr.rel (0) target = $region13
    $region12: #{tpu_custom_call.1} parent=1 // pred_region
      %s23 = ssub.s32 1024, 1024
      %24 = vsyncadd [#allocation3], %s23
      %s25 = sshll.u32 [#allocation2], 4
      %s26 = int_to_ptr.vmem [resolvable:$true] %s25
      %31 = dma.hbm_to_vmem [thread:$0]  %s2, 1024, %s26, [#allocation3], 64, 64, 4
    $region13: #{tpu_custom_call.1} parent=1 // pred_fallthru
      _
    // Predicated region
    $region14: #{tpu_custom_call.1} parent=1 // pred_check
      _
    $region15: #{tpu_custom_call.1} parent=1 // pred_check_branch
      %33 = sbr.rel (0) target = $region17
    $region16: #{tpu_custom_call.1} parent=1 // pred_region
      _
    $region17: #{tpu_custom_call.1} parent=1 // pred_fallthru
      _
    // Predicated region
    $region18: #{tpu_custom_call.1} parent=1 // pred_check
      _
    $region19: #{tpu_custom_call.1} parent=1 // pred_check_branch
      %35 = sbr.rel (0) target = $region21
    $region20: #{tpu_custom_call.1} parent=1 // pred_region
      %s37 = ssub.s32 9216, 9216
      %38 = vsyncadd [#allocation6], %s37
      %s39 = sshll.u32 [#allocation5], 4
      %s40 = int_to_ptr.vmem [resolvable:$true] %s39
      %45 = dma.hbm_to_vmem [thread:$0]  %s4, 9216, %s40, [#allocation6], 576, 576, 36
    $region21: #{tpu_custom_call.1} parent=1 // pred_fallthru
      _
    // Predicated region
    $region22: #{tpu_custom_call.1} parent=1 // pred_check
      _
    $region23: #{tpu_custom_call.1} parent=1 // pred_check_branch
      %47 = sbr.rel (0) target = $region25
    $region24: #{tpu_custom_call.1} parent=1 // pred_region
      %s49 = ssub.s32 5120, 5120
      %50 = vsyncadd [#allocation6], %s49
      %s51 = sshll.u32 [#allocation7], 4
      %s52 = int_to_ptr.vmem [resolvable:$true] %s51
      %57 = dma.hbm_to_vmem [thread:$0]  %s5, 5120, %s52, [#allocation6], 64, 64, 4
    $region25: #{tpu_custom_call.1} parent=1 // pred_fallthru
      _
    // Predicated region
    $region26: #{tpu_custom_call.1} parent=1 // pred_check
      _
    $region27: #{tpu_custom_call.1} parent=1 // pred_check_branch
      %59 = sbr.rel (0) target = $region29
    $region28: #{tpu_custom_call.1} parent=1 // pred_region
      %s61 = ssub.s32 4608, 4608
      %62 = vsyncadd [#allocation9], %s61
      %s63 = sshll.u32 [#allocation8], 4
      %s64 = int_to_ptr.vmem [resolvable:$true] %s63
      %69 = dma.hbm_to_vmem [thread:$0]  %s6, 4608, %s64, [#allocation9], 384, 384, 24
    $region29: #{tpu_custom_call.1} parent=1 // pred_fallthru
      _
    // Predicated region
    $region30: #{tpu_custom_call.1} parent=1 // pred_check
      _
    $region31: #{tpu_custom_call.1} parent=1 // pred_check_branch
      %71 = sbr.rel (0) target = $region33
    $region32: #{tpu_custom_call.1} parent=1 // pred_region
      %72 = dma.done [#allocation3], 1024
    $region33: #{tpu_custom_call.1} parent=1 // pred_fallthru
      _
    // Predicated region
    $region34: #{tpu_custom_call.1} parent=1 // pred_check
      _
    $region35: #{tpu_custom_call.1} parent=1 // pred_check_branch
      %74 = sbr.rel (0) target = $region37
    $region36: #{tpu_custom_call.1} parent=1 // pred_region
      %75 = dma.done [#allocation6], 9216
    $region37: #{tpu_custom_call.1} parent=1 // pred_fallthru
      _
    // Predicated region
    $region38: #{tpu_custom_call.1} parent=1 // pred_check
      _
    $region39: #{tpu_custom_call.1} parent=1 // pred_check_branch
      %77 = sbr.rel (0) target = $region41
    $region40: #{tpu_custom_call.1} parent=1 // pred_region
      %78 = dma.done [#allocation6], 5120
    $region41: #{tpu_custom_call.1} parent=1 // pred_fallthru
      _
    // Predicated region
    $region42: #{tpu_custom_call.1} parent=1 // pred_check
      _
    $region43: #{tpu_custom_call.1} parent=1 // pred_check_branch
      %80 = sbr.rel (0) target = $region45
    $region44: #{tpu_custom_call.1} parent=1 // pred_region
      %81 = dma.done [#allocation9], 4608
    $region45: #{tpu_custom_call.1} parent=1 // pred_fallthru
      _
    %v83 = vld [vmem:[#allocation8] ss:$8 sm:$0x7]
    %v84 = vld [vmem:[#allocation8 + $0x18] ss:$0 sm:$0xff]
    %v85 = vld [vmem:[#allocation8 + $0x30] ss:$0 sm:$0xff]
    %v86 = vld [vmem:[#allocation8 + $0x48] ss:$0 sm:$0xff]
    %s87 = scalar_lea.vmem [#allocation8], 96
    %v88 = vld [vmem:[%s87] ss:$8 sm:$0x3]
    %v89 = vld [vmem:[#allocation8 + $0x78] ss:$0 sm:$0xff]
    %v90 = vld [vmem:[#allocation8 + $0x90] ss:$0 sm:$0xff]
    %v91 = vld [vmem:[#allocation8 + $0xa8] ss:$0 sm:$0xff]
    %s92 = scalar_lea.vmem [#allocation8], 192
    %v93 = vld [vmem:[%s92] ss:$8 sm:$0x7]
    %v94 = vld [vmem:[#allocation8 + $0xd8] ss:$0 sm:$0xff]
    %v95 = vld [vmem:[#allocation8 + $0xf0] ss:$0 sm:$0xff]
    %v96 = vld [vmem:[#allocation8 + $0x108] ss:$0 sm:$0xff]
    %v97 = vld [vmem:[#allocation5] sm:$0xff]
    %v98 = vld [vmem:[#allocation5 + $0x8] sm:$0xf]
    %v99 = vld [vmem:[#allocation5 + $0x24] sm:$0xff]
    %v100 = vld [vmem:[#allocation5 + $0x2c] sm:$0xf]
    %v101 = vld [vmem:[#allocation5 + $0x48] sm:$0xff]
    %v102 = vld [vmem:[#allocation5 + $0x50] sm:$0xf]
    %v103 = vld [vmem:[#allocation5 + $0x6c] sm:$0xff]
    %v104 = vld [vmem:[#allocation5 + $0x74] sm:$0xf]
    %v105 = vld [vmem:[#allocation5 + $0x90] sm:$0xff]
    %v106 = vld [vmem:[#allocation5 + $0x98] sm:$0xf]
    %v107 = vld [vmem:[#allocation5 + $0xb4] sm:$0xff]
    %v108 = vld [vmem:[#allocation5 + $0xbc] sm:$0xf]
    %v109 = vld [vmem:[#allocation5 + $0xd8] sm:$0xff]
    %v110 = vld [vmem:[#allocation5 + $0xe0] sm:$0xf]
    %v111 = vld [vmem:[#allocation5 + $0xfc] sm:$0xff]
    %v112 = vld [vmem:[#allocation5 + $0x104] sm:$0xf]
    %v113 = vld [vmem:[#allocation5 + $0x120] sm:$0xff]
    %v114 = vld [vmem:[#allocation5 + $0x128] sm:$0xf]
    %v115 = vld [vmem:[#allocation5 + $0x144] sm:$0xff]
    %v116 = vld [vmem:[#allocation5 + $0x14c] sm:$0xf]
    %v117 = vld [vmem:[#allocation5 + $0x168] sm:$0xff]
    %v118 = vld [vmem:[#allocation5 + $0x170] sm:$0xf]
    %v119 = vld [vmem:[#allocation5 + $0x18c] sm:$0xff]
    %v120 = vld [vmem:[#allocation5 + $0x194] sm:$0xf]
    %v121 = vld [vmem:[#allocation5 + $0x1b0] sm:$0xff]
    %v122 = vld [vmem:[#allocation5 + $0x1b8] sm:$0xf]
    %v123 = vld [vmem:[#allocation5 + $0x1d4] sm:$0xff]
    %v124 = vld [vmem:[#allocation5 + $0x1dc] sm:$0xf]
    %v125 = vld [vmem:[#allocation5 + $0x1f8] sm:$0xff]
    %v126 = vld [vmem:[#allocation5 + $0x200] sm:$0xf]
    %v127 = vld [vmem:[#allocation5 + $0x21c] sm:$0xff]
    %v128 = vld [vmem:[#allocation5 + $0x224] sm:$0xf]
    %v129 = vld [vmem:[#allocation5 + $0xc] sm:$0xf]
    %v130 = vld [vmem:[#allocation5 + $0x30] sm:$0xf]
    %v131 = vld [vmem:[#allocation5 + $0x54] sm:$0xf]
    %v132 = vld [vmem:[#allocation5 + $0x78] sm:$0xf]
    %v133 = vld [vmem:[#allocation5 + $0x9c] sm:$0xf]
    %v134 = vld [vmem:[#allocation5 + $0xc0] sm:$0xf]
    %v135 = vld [vmem:[#allocation5 + $0xe4] sm:$0xf]
    %v136 = vld [vmem:[#allocation5 + $0x108] sm:$0xf]
    %v137 = vld [vmem:[#allocation5 + $0x12c] sm:$0xf]
    %v138 = vld [vmem:[#allocation5 + $0x150] sm:$0xf]
    %v139 = vld [vmem:[#allocation5 + $0x174] sm:$0xf]
    %v140 = vld [vmem:[#allocation5 + $0x198] sm:$0xf]
    %v141 = vld [vmem:[#allocation5 + $0x1bc] sm:$0xf]
    %v142 = vld [vmem:[#allocation5 + $0x1e0] sm:$0xf]
    %v143 = vld [vmem:[#allocation5 + $0x204] sm:$0xf]
    %v144 = vld [vmem:[#allocation5 + $0x228] sm:$0xf]
    %v145 = vld [vmem:[#allocation5 + $0x10] sm:$0xff]
    %v146 = vld [vmem:[#allocation5 + $0x34] sm:$0xff]
    %v147 = vld [vmem:[#allocation5 + $0x58] sm:$0xff]
    %v148 = vld [vmem:[#allocation5 + $0x7c] sm:$0xff]
    %v149 = vld [vmem:[#allocation5 + $0xa0] sm:$0xff]
    %v150 = vld [vmem:[#allocation5 + $0xc4] sm:$0xff]
    %v151 = vld [vmem:[#allocation5 + $0xe8] sm:$0xff]
    %v152 = vld [vmem:[#allocation5 + $0x10c] sm:$0xff]
    %v153 = vld [vmem:[#allocation5 + $0x130] sm:$0xff]
    %v154 = vld [vmem:[#allocation5 + $0x154] sm:$0xff]
    %v155 = vld [vmem:[#allocation5 + $0x178] sm:$0xff]
    %v156 = vld [vmem:[#allocation5 + $0x19c] sm:$0xff]
    %v157 = vld [vmem:[#allocation5 + $0x1c0] sm:$0xff]
    %v158 = vld [vmem:[#allocation5 + $0x1e4] sm:$0xff]
    %v159 = vld [vmem:[#allocation5 + $0x208] sm:$0xff]
    %v160 = vld [vmem:[#allocation5 + $0x22c] sm:$0xff]
    %v161 = vld [vmem:[#allocation5 + $0x18] sm:$0xff]
    %v162 = vld [vmem:[#allocation5 + $0x20] sm:$0xf]
    %v163 = vld [vmem:[#allocation5 + $0x3c] sm:$0xff]
    %v164 = vld [vmem:[#allocation5 + $0x44] sm:$0xf]
    %v165 = vld [vmem:[#allocation5 + $0x60] sm:$0xff]
    %v166 = vld [vmem:[#allocation5 + $0x68] sm:$0xf]
    %v167 = vld [vmem:[#allocation5 + $0x84] sm:$0xff]
    %v168 = vld [vmem:[#allocation5 + $0x8c] sm:$0xf]
    %v169 = vld [vmem:[#allocation5 + $0xa8] sm:$0xff]
    %v170 = vld [vmem:[#allocation5 + $0xb0] sm:$0xf]
    %v171 = vld [vmem:[#allocation5 + $0xcc] sm:$0xff]
    %v172 = vld [vmem:[#allocation5 + $0xd4] sm:$0xf]
    %v173 = vld [vmem:[#allocation5 + $0xf0] sm:$0xff]
    %v174 = vld [vmem:[#allocation5 + $0xf8] sm:$0xf]
    %v175 = vld [vmem:[#allocation5 + $0x114] sm:$0xff]
    %v176 = vld [vmem:[#allocation5 + $0x11c] sm:$0xf]
    %v177 = vld [vmem:[#allocation5 + $0x138] sm:$0xff]
    %v178 = vld [vmem:[#allocation5 + $0x140] sm:$0xf]
    %v179 = vld [vmem:[#allocation5 + $0x15c] sm:$0xff]
    %v180 = vld [vmem:[#allocation5 + $0x164] sm:$0xf]
    %v181 = vld [vmem:[#allocation5 + $0x180] sm:$0xff]
    %v182 = vld [vmem:[#allocation5 + $0x188] sm:$0xf]
    %v183 = vld [vmem:[#allocation5 + $0x1a4] sm:$0xff]
    %v184 = vld [vmem:[#allocation5 + $0x1ac] sm:$0xf]
    %v185 = vld [vmem:[#allocation5 + $0x1c8] sm:$0xff]
    %v186 = vld [vmem:[#allocation5 + $0x1d0] sm:$0xf]
    %v187 = vld [vmem:[#allocation5 + $0x1ec] sm:$0xff]
    %v188 = vld [vmem:[#allocation5 + $0x1f4] sm:$0xf]
    %v189 = vld [vmem:[#allocation5 + $0x210] sm:$0xff]
    %v190 = vld [vmem:[#allocation5 + $0x218] sm:$0xf]
    %v191 = vld [vmem:[#allocation5 + $0x234] sm:$0xff]
    %v192 = vld [vmem:[#allocation5 + $0x23c] sm:$0xf]
    %v193 = vld [vmem:[#allocation7] sm:$0xf]
    %v194 = vld [vmem:[#allocation7 + $0x4] sm:$0xf]
    %v195 = vld [vmem:[#allocation7 + $0x8] sm:$0xf]
    %v196 = vld [vmem:[#allocation7 + $0xc] sm:$0xf]
    %v197 = vld [vmem:[#allocation7 + $0x10] sm:$0xf]
    %v198 = vld [vmem:[#allocation7 + $0x14] sm:$0xf]
    %v199 = vld [vmem:[#allocation7 + $0x18] sm:$0xf]
    %v200 = vld [vmem:[#allocation7 + $0x1c] sm:$0xf]
    %v201 = vld [vmem:[#allocation7 + $0x20] sm:$0xf]
    %v202 = vld [vmem:[#allocation7 + $0x24] sm:$0xf]
    %v203 = vld [vmem:[#allocation7 + $0x28] sm:$0xf]
    %v204 = vld [vmem:[#allocation7 + $0x2c] sm:$0xf]
    %v205 = vld [vmem:[#allocation7 + $0x30] sm:$0xf]
    %v206 = vld [vmem:[#allocation7 + $0x34] sm:$0xf]
    %v207 = vld [vmem:[#allocation7 + $0x38] sm:$0xf]
    %v208 = vld [vmem:[#allocation7 + $0x3c] sm:$0xf]
    %v209 = vld [vmem:[#allocation7 + $0x40] sm:$0xf]
    %v210 = vld [vmem:[#allocation7 + $0x44] sm:$0xf]
    %v211 = vld [vmem:[#allocation7 + $0x48] sm:$0xf]
    %v212 = vld [vmem:[#allocation7 + $0x4c] sm:$0xf]
    %v213 = vld [vmem:[#allocation7 + $0x50] sm:$0xf]
    %v214 = vld [vmem:[#allocation7 + $0x54] sm:$0xf]
    %v215 = vld [vmem:[#allocation7 + $0x58] sm:$0xf]
    %v216 = vld [vmem:[#allocation7 + $0x5c] sm:$0xf]
    %v217 = vld [vmem:[#allocation7 + $0x60] sm:$0xf]
    %v218 = vld [vmem:[#allocation7 + $0x64] sm:$0xf]
    %v219 = vld [vmem:[#allocation7 + $0x68] sm:$0xf]
    %v220 = vld [vmem:[#allocation7 + $0x6c] sm:$0xf]
    %v221 = vld [vmem:[#allocation7 + $0x70] sm:$0xf]
    %v222 = vld [vmem:[#allocation7 + $0x74] sm:$0xf]
    %v223 = vld [vmem:[#allocation7 + $0x78] sm:$0xf]
    %v224 = vld [vmem:[#allocation7 + $0x7c] sm:$0xf]
    %v225 = vld [vmem:[#allocation7 + $0x80] sm:$0xf]
    %v226 = vld [vmem:[#allocation7 + $0x84] sm:$0xf]
    %v227 = vld [vmem:[#allocation7 + $0x88] sm:$0xf]
    %v228 = vld [vmem:[#allocation7 + $0x8c] sm:$0xf]
    %v229 = vld [vmem:[#allocation7 + $0x90] sm:$0xf]
    %v230 = vld [vmem:[#allocation7 + $0x94] sm:$0xf]
    %v231 = vld [vmem:[#allocation7 + $0x98] sm:$0xf]
    %v232 = vld [vmem:[#allocation7 + $0x9c] sm:$0xf]
    %v233 = vld [vmem:[#allocation7 + $0xa0] sm:$0xf]
    %v234 = vld [vmem:[#allocation7 + $0xa4] sm:$0xf]
    %v235 = vld [vmem:[#allocation7 + $0xa8] sm:$0xf]
    %v236 = vld [vmem:[#allocation7 + $0xac] sm:$0xf]
    %v237 = vld [vmem:[#allocation7 + $0xb0] sm:$0xf]
    %v238 = vld [vmem:[#allocation7 + $0xb4] sm:$0xf]
    %v239 = vld [vmem:[#allocation7 + $0xb8] sm:$0xf]
    %v240 = vld [vmem:[#allocation7 + $0xbc] sm:$0xf]
    %v241 = vld [vmem:[#allocation7 + $0xc0] sm:$0xf]
    %v242 = vld [vmem:[#allocation7 + $0xc4] sm:$0xf]
    %v243 = vld [vmem:[#allocation7 + $0xc8] sm:$0xf]
    %v244 = vld [vmem:[#allocation7 + $0xcc] sm:$0xf]
    %v245 = vld [vmem:[#allocation7 + $0xd0] sm:$0xf]
    %v246 = vld [vmem:[#allocation7 + $0xd4] sm:$0xf]
    %v247 = vld [vmem:[#allocation7 + $0xd8] sm:$0xf]
    %v248 = vld [vmem:[#allocation7 + $0xdc] sm:$0xf]
    %v249 = vld [vmem:[#allocation7 + $0xe0] sm:$0xf]
    %v250 = vld [vmem:[#allocation7 + $0xe4] sm:$0xf]
    %v251 = vld [vmem:[#allocation7 + $0xe8] sm:$0xf]
    %v252 = vld [vmem:[#allocation7 + $0xec] sm:$0xf]
    %v253 = vld [vmem:[#allocation7 + $0xf0] sm:$0xf]
    %v254 = vld [vmem:[#allocation7 + $0xf4] sm:$0xf]
    %v255 = vld [vmem:[#allocation7 + $0xf8] sm:$0xf]
    %v256 = vld [vmem:[#allocation7 + $0xfc] sm:$0xf]
    %v257 = vld [vmem:[#allocation7 + $0x100] sm:$0xf]
    %v258 = vld [vmem:[#allocation7 + $0x104] sm:$0xf]
    %v259 = vld [vmem:[#allocation7 + $0x108] sm:$0xf]
    %v260 = vld [vmem:[#allocation7 + $0x10c] sm:$0xf]
    %v261 = vld [vmem:[#allocation7 + $0x110] sm:$0xf]
    %v262 = vld [vmem:[#allocation7 + $0x114] sm:$0xf]
    %v263 = vld [vmem:[#allocation7 + $0x118] sm:$0xf]
    %v264 = vld [vmem:[#allocation7 + $0x11c] sm:$0xf]
    %v265 = vld [vmem:[#allocation7 + $0x120] sm:$0xf]
    %v266 = vld [vmem:[#allocation7 + $0x124] sm:$0xf]
    %v267 = vld [vmem:[#allocation7 + $0x128] sm:$0xf]
    %v268 = vld [vmem:[#allocation7 + $0x12c] sm:$0xf]
    %v269 = vld [vmem:[#allocation7 + $0x130] sm:$0xf]
    %v270 = vld [vmem:[#allocation7 + $0x134] sm:$0xf]
    %v271 = vld [vmem:[#allocation7 + $0x138] sm:$0xf]
    %v272 = vld [vmem:[#allocation7 + $0x13c] sm:$0xf]
    %v273 = vld [vmem:[%s0] sm:$0xff]
    %v274 = vld [vmem:[%s0 + $0x8] sm:$0xff]
    %v275 = vlaneseq
    %v276 = vand.u32 %v275, 127
    %277 = vset.pattern.permute.xlu0 0
    %278 = vperm.xlu0 %277, %v273
    %v279 = vpop.permute.xlu0 %278
    %280 = vset.pattern.permute.xlu0 0
    %281 = vperm.xlu0 %280, %v274
    %v282 = vpop.permute.xlu0 %281
    %vm283 = vcmp.eq.s32.totalorder %v276, %v279
    %vm284 = vcmp.eq.s32.totalorder %v276, %v282
    %v285 = vsel %vm283, 1.0, 0.0
    %v286 = vsel %vm284, 1.0, 0.0
    %v287 = vpack.c.bf16 %v286, %v285
    %v288 = vld [vmem:[#allocation2] sm:$0xf]
    %v289 = vld [vmem:[#allocation2 + $0x4] sm:$0xf]
    %v290 = vld [vmem:[#allocation2 + $0x8] sm:$0xf]
    %v291 = vld [vmem:[#allocation2 + $0xc] sm:$0xf]
    %v292 = vld [vmem:[#allocation2 + $0x10] sm:$0xf]
    %v293 = vld [vmem:[#allocation2 + $0x14] sm:$0xf]
    %v294 = vld [vmem:[#allocation2 + $0x18] sm:$0xf]
    %v295 = vld [vmem:[#allocation2 + $0x1c] sm:$0xf]
    %v296 = vld [vmem:[#allocation2 + $0x20] sm:$0xf]
    %v297 = vld [vmem:[#allocation2 + $0x24] sm:$0xf]
    %v298 = vld [vmem:[#allocation2 + $0x28] sm:$0xf]
    %v299 = vld [vmem:[#allocation2 + $0x2c] sm:$0xf]
    %v300 = vld [vmem:[#allocation2 + $0x30] sm:$0xf]
    %v301 = vld [vmem:[#allocation2 + $0x34] sm:$0xf]
    %v302 = vld [vmem:[#allocation2 + $0x38] sm:$0xf]
    %v303 = vld [vmem:[#allocation2 + $0x3c] sm:$0xf]
    %v304 = vld [vmem:[%s3] sm:$0xff]
    %v321 = vunpack.c.l.b16 %v288
    %v322 = vunpack.c.l.b16 %v289
    %v323 = vunpack.c.l.b16 %v290
    %v324 = vunpack.c.l.b16 %v291
    %v325 = vunpack.c.l.b16 %v292
    %v326 = vunpack.c.l.b16 %v293
    %v327 = vunpack.c.l.b16 %v294
    %v328 = vunpack.c.l.b16 %v295
    %v329 = vunpack.c.l.b16 %v296
    %v330 = vunpack.c.l.b16 %v297
    %v331 = vunpack.c.l.b16 %v298
    %v332 = vunpack.c.l.b16 %v299
    %v333 = vunpack.c.l.b16 %v300
    %v334 = vunpack.c.l.b16 %v301
    %v335 = vunpack.c.l.b16 %v302
    %v336 = vunpack.c.l.b16 %v303
    %v337 = vpack.c.b16 %v322, %v321
    %v338 = vpack.c.b16 %v324, %v323
    %v339 = vpack.c.b16 %v326, %v325
    %v340 = vpack.c.b16 %v328, %v327
    %v341 = vpack.c.b16 %v330, %v329
    %v342 = vpack.c.b16 %v332, %v331
    %v343 = vpack.c.b16 %v334, %v333
    %v344 = vpack.c.b16 %v336, %v335
    %353 = vmatprep.subr.bf16.mxu0 0
    %354 = vmatpush1.bf16.msra.mxu0 %v337
    %355 = vmatprep.subr.bf16.mxu0 0
    %356 = vmatpush1.bf16.msra.mxu0 %v338
    %357 = vmatprep.subr.bf16.mxu0 0
    %358 = vmatpush1.bf16.msra.mxu0 %v339
    %359 = vmatprep.subr.bf16.mxu0 0
    %360 = vmatpush1.bf16.msra.mxu0 %v340
    %361 = vmatprep.subr.bf16.mxu0 0
    %362 = vmatpush1.bf16.msra.mxu0 %v341
    %363 = vmatprep.subr.bf16.mxu0 0
    %364 = vmatpush1.bf16.msra.mxu0 %v342
    %365 = vmatprep.subr.bf16.mxu0 0
    %366 = vmatpush1.bf16.msra.mxu0 %v343
    %367 = vmatprep.subr.bf16.mxu0 0
    %368 = vmatpush1.bf16.msra.mxu0 %v344
    %369 = vmatprep.subr.bf16.mxu0 0
    %370 = vmatpush1.bf16.msra.mxu0 0
    %371 = vmatprep.subr.bf16.mxu0 0
    %372 = vmatpush1.bf16.msra.mxu0 0
    %373 = vmatprep.subr.bf16.mxu0 0
    %374 = vmatpush1.bf16.msra.mxu0 0
    %375 = vmatprep.subr.bf16.mxu0 0
    %376 = vmatpush1.bf16.msra.mxu0 0
    %377 = vmatprep.subr.bf16.mxu0 0
    %378 = vmatpush1.bf16.msra.mxu0 0
    %379 = vmatprep.subr.bf16.mxu0 0
    %380 = vmatpush1.bf16.msra.mxu0 0
    %381 = vmatprep.subr.bf16.mxu0 0
    %382 = vmatpush1.bf16.msra.mxu0 0
    %383 = vmatprep.subr.bf16.mxu0 0
    %384 = vmatpush1.bf16.msra.mxu0 0
    %385 = vmatprep.mubr.bf16.mxu0 0
    %386 = vmatmul.mubr.bf16.gmra.mrb[0].mxu0 %v287
    %v387 = vpop.f32.mrb[0].mxu0
    %v388 = vadd.f32 %v304, %v387
    %v389 = vpop.f32.mrb[0].mxu0
    %v390 = vpop.f32.mrb[0].mxu0
    %v391 = vadd.f32 %v304, %v390
    %v392 = vpop.f32.mrb[0].mxu0
    %393 = vdwg.mxu0
    %394 = vadd.xlane.f32.xlu0 %v388
    %v395 = vpop.xlane.xlu0 %394
    %396 = vadd.xlane.f32.xlu0 %v391
    %v397 = vpop.xlane.xlu0 %396
    %v398 = vrcp.pop 128.0
    %v399 = vmul.f32 %v395, %v398
    %v400 = vmul.f32 %v397, %v398
    %v401 = vsub.f32 %v388, %v399
    %v402 = vsub.f32 %v391, %v400
    %v403 = vmul.f32 %v401, %v401
    %v404 = vmul.f32 %v402, %v402
    %405 = vadd.xlane.f32.xlu0 %v403
    %v406 = vpop.xlane.xlu0 %405
    %407 = vadd.xlane.f32.xlu0 %v404
    %v408 = vpop.xlane.xlu0 %407
    %v409 = vmul.f32 %v406, %v398
    %v410 = vmul.f32 %v408, %v398
    %v411 = vadd.f32 %v409, 1e-12
    %v412 = vadd.f32 %v410, 1e-12
    %v413 = vrsqrt.pop %v411
    %v414 = vrsqrt.pop %v412
    %v415 = vmul.f32 %v401, %v413
    %v416 = vmul.f32 %v402, %v414
    %v417 = vmul.f32 %v415, %v95
    %v418 = vmul.f32 %v416, %v95
    %v419 = vadd.f32 %v417, %v96
    %v420 = vadd.f32 %v418, %v96
    %v421 = vpack.c.bf16 %v420, %v419
    %v422 = vld [vmem:[%s1] sm:$0x1]
    %vm423 = vcmp.gt.s32.totalorder %v422, 0
    %v424 = vsel %vm423, 0.0, -1e+09
    %v425 = vlaneseq
    %v426 = vshrl.u32 %v425, 7
    %v427 = vadd.s32 %v426, 8
    %vm428 = vcmp.ge.s32.totalorder %v426, 0
    %vm429 = vcmp.ge.s32.totalorder %v427, 0
    %vm430 = vcmp.lt.s32.totalorder %v426, 8
    %vm431 = vcmp.lt.s32.totalorder %v427, 8
    %vm432 = vmand %vm428, %vm430
    %vm433 = vmand %vm429, %vm431
    %vm434 = vcmp.ge.s32.totalorder %v276, 0
    %vm435 = vcmp.lt.s32.totalorder %v276, 8
    %vm436 = vmand %vm434, %vm435
    %vm437 = vmand %vm432, %vm436
    %vm438 = vmand %vm433, %vm436
    %vm439 = vcmp.ge.s32.totalorder %v426, 8
    %vm440 = vcmp.ge.s32.totalorder %v427, 8
    %vm441 = vcmp.lt.s32.totalorder %v426, 16
    %vm442 = vcmp.lt.s32.totalorder %v427, 16
    %vm443 = vmand %vm439, %vm441
    %vm444 = vmand %vm440, %vm442
    %vm445 = vcmp.ge.s32.totalorder %v276, 8
    %vm446 = vcmp.lt.s32.totalorder %v276, 16
    %vm447 = vmand %vm445, %vm446
    %vm448 = vmand %vm443, %vm447
    %vm449 = vmand %vm444, %vm447
    %vm450 = vmor %vm437, %vm448
    %vm451 = vmor %vm438, %vm449
    %v453 = vlaneseq
    %v454 = vshrl.u32 %v453, 7
    %v455 = vsub.s32 0, %v454
    %v456 = vrot.slane %v424, %v455
    %v458 = vsel %vm450, %v456, -1e+09
    %v459 = vsel %vm451, %v456, -1e+09
    %v461 = vlaneseq
    %v462 = vshrl.u32 %v461, 7
    %v463 = vsub.s32 0, %v462
    %v464 = vrot.slane %v83, %v463
    %v465 = vlaneseq
    %v466 = vshrl.u32 %v465, 7
    %v467 = vsub.s32 1, %v466
    %v468 = vrot.slane %v83, %v467
    %v469 = vlaneseq
    %v470 = vshrl.u32 %v469, 7
    %v471 = vsub.s32 2, %v470
    %v472 = vrot.slane %v83, %v471
    %v508 = vunpack.c.l.b16 %v97
    %v509 = vunpack.c.h.b16 %v97
    %v510 = vunpack.c.l.b16 %v98
    %v511 = vunpack.c.l.b16 %v99
    %v512 = vunpack.c.h.b16 %v99
    %v513 = vunpack.c.l.b16 %v100
    %v514 = vunpack.c.l.b16 %v101
    %v515 = vunpack.c.h.b16 %v101
    %v516 = vunpack.c.l.b16 %v102
    %v517 = vunpack.c.l.b16 %v103
    %v518 = vunpack.c.h.b16 %v103
    %v519 = vunpack.c.l.b16 %v104
    %v520 = vunpack.c.l.b16 %v105
    %v521 = vunpack.c.h.b16 %v105
    %v522 = vunpack.c.l.b16 %v106
    %v523 = vunpack.c.l.b16 %v107
    %v524 = vunpack.c.h.b16 %v107
    %v525 = vunpack.c.l.b16 %v108
    %v526 = vunpack.c.l.b16 %v109
    %v527 = vunpack.c.h.b16 %v109
    %v528 = vunpack.c.l.b16 %v110
    %v529 = vunpack.c.l.b16 %v111
    %v530 = vunpack.c.h.b16 %v111
    %v531 = vunpack.c.l.b16 %v112
    %v532 = vunpack.c.l.b16 %v113
    %v533 = vunpack.c.h.b16 %v113
    %v534 = vunpack.c.l.b16 %v114
    %v535 = vunpack.c.l.b16 %v115
    %v536 = vunpack.c.h.b16 %v115
    %v537 = vunpack.c.l.b16 %v116
    %v538 = vunpack.c.l.b16 %v117
    %v539 = vunpack.c.h.b16 %v117
    %v540 = vunpack.c.l.b16 %v118
    %v541 = vunpack.c.l.b16 %v119
    %v542 = vunpack.c.h.b16 %v119
    %v543 = vunpack.c.l.b16 %v120
    %v544 = vunpack.c.l.b16 %v121
    %v545 = vunpack.c.h.b16 %v121
    %v546 = vunpack.c.l.b16 %v122
    %v547 = vunpack.c.l.b16 %v123
    %v548 = vunpack.c.h.b16 %v123
    %v549 = vunpack.c.l.b16 %v124
    %v550 = vunpack.c.l.b16 %v125
    %v551 = vunpack.c.h.b16 %v125
    %v552 = vunpack.c.l.b16 %v126
    %v553 = vunpack.c.l.b16 %v127
    %v554 = vunpack.c.h.b16 %v127
    %v555 = vunpack.c.l.b16 %v128
    %v556 = vpack.c.b16 %v511, %v508
    %v557 = vpack.c.b16 %v512, %v509
    %v558 = vpack.c.b16 %v513, %v510
    %v559 = vpack.c.b16 %v517, %v514
    %v560 = vpack.c.b16 %v518, %v515
    %v561 = vpack.c.b16 %v519, %v516
    %v562 = vpack.c.b16 %v523, %v520
    %v563 = vpack.c.b16 %v524, %v521
    %v564 = vpack.c.b16 %v525, %v522
    %v565 = vpack.c.b16 %v529, %v526
    %v566 = vpack.c.b16 %v530, %v527
    %v567 = vpack.c.b16 %v531, %v528
    %v568 = vpack.c.b16 %v535, %v532
    %v569 = vpack.c.b16 %v536, %v533
    %v570 = vpack.c.b16 %v537, %v534
    %v571 = vpack.c.b16 %v541, %v538
    %v572 = vpack.c.b16 %v542, %v539
    %v573 = vpack.c.b16 %v543, %v540
    %v574 = vpack.c.b16 %v547, %v544
    %v575 = vpack.c.b16 %v548, %v545
    %v576 = vpack.c.b16 %v549, %v546
    %v577 = vpack.c.b16 %v553, %v550
    %v578 = vpack.c.b16 %v554, %v551
    %v579 = vpack.c.b16 %v555, %v552
    %604 = vmatprep.subr.bf16.mxu0 %v557
    %605 = vmatpush1.bf16.msra.mxu0 %v556
    %606 = vmatprep.subr.bf16.mxu0 %v560
    %607 = vmatpush1.bf16.msra.mxu0 %v559
    %608 = vmatprep.subr.bf16.mxu0 %v563
    %609 = vmatpush1.bf16.msra.mxu0 %v562
    %610 = vmatprep.subr.bf16.mxu0 %v566
    %611 = vmatpush1.bf16.msra.mxu0 %v565
    %612 = vmatprep.subr.bf16.mxu0 %v569
    %613 = vmatpush1.bf16.msra.mxu0 %v568
    %614 = vmatprep.subr.bf16.mxu0 %v572
    %615 = vmatpush1.bf16.msra.mxu0 %v571
    %616 = vmatprep.subr.bf16.mxu0 %v575
    %617 = vmatpush1.bf16.msra.mxu0 %v574
    %618 = vmatprep.subr.bf16.mxu0 %v578
    %619 = vmatpush1.bf16.msra.mxu0 %v577
    %620 = vmatprep.subr.bf16.mxu0 0
    %621 = vmatpush1.bf16.msra.mxu0 0
    %622 = vmatprep.subr.bf16.mxu0 0
    %623 = vmatpush1.bf16.msra.mxu0 0
    %624 = vmatprep.subr.bf16.mxu0 0
    %625 = vmatpush1.bf16.msra.mxu0 0
    %626 = vmatprep.subr.bf16.mxu0 0
    %627 = vmatpush1.bf16.msra.mxu0 0
    %628 = vmatprep.subr.bf16.mxu0 0
    %629 = vmatpush1.bf16.msra.mxu0 0
    %630 = vmatprep.subr.bf16.mxu0 0
    %631 = vmatpush1.bf16.msra.mxu0 0
    %632 = vmatprep.subr.bf16.mxu0 0
    %633 = vmatpush1.bf16.msra.mxu0 0
    %634 = vmatprep.subr.bf16.mxu0 0
    %635 = vmatpush1.bf16.msra.mxu0 0
    %636 = vmatprep.mubr.bf16.mxu0 0
    %637 = vmatmul.mubr.bf16.gmra.mrb[0].mxu0 %v421
    %v638 = vpop.f32.mrb[0].mxu0
    %v639 = vadd.f32 %v464, %v638
    %v640 = vpop.f32.mrb[0].mxu0
    %v641 = vadd.f32 %v468, %v640
    %v642 = vpop.f32.mrb[0].mxu0
    %v643 = vadd.f32 %v464, %v642
    %v644 = vpop.f32.mrb[0].mxu0
    %v645 = vadd.f32 %v468, %v644
    %646 = vdwg.mxu0
    %647 = vmatprep.subr.bf16.mxu0 0
    %648 = vmatpush1.bf16.msra.mxu0 %v558
    %649 = vmatprep.subr.bf16.mxu0 0
    %650 = vmatpush1.bf16.msra.mxu0 %v561
    %651 = vmatprep.subr.bf16.mxu0 0
    %652 = vmatpush1.bf16.msra.mxu0 %v564
    %653 = vmatprep.subr.bf16.mxu0 0
    %654 = vmatpush1.bf16.msra.mxu0 %v567
    %655 = vmatprep.subr.bf16.mxu0 0
    %656 = vmatpush1.bf16.msra.mxu0 %v570
    %657 = vmatprep.subr.bf16.mxu0 0
    %658 = vmatpush1.bf16.msra.mxu0 %v573
    %659 = vmatprep.subr.bf16.mxu0 0
    %660 = vmatpush1.bf16.msra.mxu0 %v576
    %661 = vmatprep.subr.bf16.mxu0 0
    %662 = vmatpush1.bf16.msra.mxu0 %v579
    %663 = vmatprep.subr.bf16.mxu0 0
    %664 = vmatpush1.bf16.msra.mxu0 0
    %665 = vmatprep.subr.bf16.mxu0 0
    %666 = vmatpush1.bf16.msra.mxu0 0
    %667 = vmatprep.subr.bf16.mxu0 0
    %668 = vmatpush1.bf16.msra.mxu0 0
    %669 = vmatprep.subr.bf16.mxu0 0
    %670 = vmatpush1.bf16.msra.mxu0 0
    %671 = vmatprep.subr.bf16.mxu0 0
    %672 = vmatpush1.bf16.msra.mxu0 0
    %673 = vmatprep.subr.bf16.mxu0 0
    %674 = vmatpush1.bf16.msra.mxu0 0
    %675 = vmatprep.subr.bf16.mxu0 0
    %676 = vmatpush1.bf16.msra.mxu0 0
    %677 = vmatprep.subr.bf16.mxu0 0
    %678 = vmatpush1.bf16.msra.mxu0 0
    %679 = vmatprep.mubr.bf16.mxu0 0
    %680 = vmatmul.mubr.bf16.gmra.mrb[0].mxu0 %v421
    %v681 = vpop.f32.mrb[0].mxu0
    %v682 = vadd.f32 %v472, %v681
    %v683 = vpop.f32.mrb[0].mxu0
    %v684 = vpop.f32.mrb[0].mxu0
    %v685 = vadd.f32 %v472, %v684
    %v686 = vpop.f32.mrb[0].mxu0
    %687 = vdwg.mxu0
    %v688 = vpack.c.bf16 %v643, %v639
    %v689 = vpack.c.bf16 %v645, %v641
    %v690 = vpack.c.bf16 %v685, %v682
    %691 = vmatprep.subr.bf16.mxu0 0
    %692 = vmatpush1.bf16.xpose.msra.mxu0 %v689
    %693 = vmatprep.subr.bf16.mxu0 0
    %694 = vmatpush1.bf16.xpose.msra.mxu0 0
    %695 = vmatprep.subr.bf16.mxu0 0
    %696 = vmatpush1.bf16.xpose.msra.mxu0 0
    %697 = vmatprep.subr.bf16.mxu0 0
    %698 = vmatpush1.bf16.xpose.msra.mxu0 0
    %699 = vmatprep.subr.bf16.mxu0 0
    %700 = vmatpush1.bf16.xpose.msra.mxu0 0
    %701 = vmatprep.subr.bf16.mxu0 0
    %702 = vmatpush1.bf16.xpose.msra.mxu0 0
    %703 = vmatprep.subr.bf16.mxu0 0
    %704 = vmatpush1.bf16.xpose.msra.mxu0 0
    %705 = vmatprep.subr.bf16.mxu0 0
    %706 = vmatpush1.bf16.xpose.msra.mxu0 0
    %707 = vmatprep.subr.bf16.mxu0 0
    %708 = vmatpush1.bf16.xpose.msra.mxu0 0
    %709 = vmatprep.subr.bf16.mxu0 0
    %710 = vmatpush1.bf16.xpose.msra.mxu0 0
    %711 = vmatprep.subr.bf16.mxu0 0
    %712 = vmatpush1.bf16.xpose.msra.mxu0 0
    %713 = vmatprep.subr.bf16.mxu0 0
    %714 = vmatpush1.bf16.xpose.msra.mxu0 0
    %715 = vmatprep.subr.bf16.mxu0 0
    %716 = vmatpush1.bf16.xpose.msra.mxu0 0
    %717 = vmatprep.subr.bf16.mxu0 0
    %718 = vmatpush1.bf16.xpose.msra.mxu0 0
    %719 = vmatprep.subr.bf16.mxu0 0
    %720 = vmatpush1.bf16.xpose.msra.mxu0 0
    %721 = vmatprep.subr.bf16.mxu0 0
    %722 = vmatpush1.bf16.xpose.msra.mxu0 0
    %723 = vmatprep.mubr.bf16.mxu0 0
    %724 = vmatmul.mubr.bf16.gmra.mrb[0].mxu0 %v688
    %v725 = vpop.f32.mrb[0].mxu0
    %v726 = vadd.f32 %v458, %v725
    %v727 = vpop.f32.mrb[0].mxu0
    %v728 = vpop.f32.mrb[0].mxu0
    %v729 = vadd.f32 %v459, %v728
    %v730 = vpop.f32.mrb[0].mxu0
    %731 = vdwg.mxu0
    %vm732 = vcmask 130048
    %v733 = vsel %vm732, %v726, -inf
    %734 = vmax.xlane.f32.xlu0 %v733
    %v735 = vpop.xlane.xlu0 %734
    %v736 = vsel %vm732, %v729, -inf
    %737 = vmax.xlane.f32.xlu0 %v736
    %v738 = vpop.xlane.xlu0 %737
    %v739 = vsub.f32 %v726, %v735
    %v740 = vsub.f32 %v729, %v738
    %v741 = vmul.f32 %v739, 1.442695
    %v742 = vpow.pop %v741
    %v743 = vmul.f32 %v740, 1.442695
    %v744 = vpow.pop %v743
    %v745 = vsel %vm732, %v742, 0.0
    %746 = vadd.xlane.f32.xlu0 %v745
    %v747 = vpop.xlane.xlu0 %746
    %v748 = vsel %vm732, %v744, 0.0
    %749 = vadd.xlane.f32.xlu0 %v748
    %v750 = vpop.xlane.xlu0 %749
    %v751 = vrcp.pop %v747
    %v752 = vrcp.pop %v750
    %v753 = vmul.f32 %v742, %v751
    %v754 = vmul.f32 %v744, %v752
    %v755 = vpack.c.bf16 %v754, %v753
    %v757 = vsel %vm732, %v755, 0
    %759 = vmatprep.subr.bf16.mxu0 0
    %760 = vmatpush1.bf16.msra.mxu0 %v690
    %761 = vmatprep.subr.bf16.mxu0 0
    %762 = vmatpush1.bf16.msra.mxu0 0
    %763 = vmatprep.subr.bf16.mxu0 0
    %764 = vmatpush1.bf16.msra.mxu0 0
    %765 = vmatprep.subr.bf16.mxu0 0
    %766 = vmatpush1.bf16.msra.mxu0 0
    %767 = vmatprep.subr.bf16.mxu0 0
    %768 = vmatpush1.bf16.msra.mxu0 0
    %769 = vmatprep.subr.bf16.mxu0 0
    %770 = vmatpush1.bf16.msra.mxu0 0
    %771 = vmatprep.subr.bf16.mxu0 0
    %772 = vmatpush1.bf16.msra.mxu0 0
    %773 = vmatprep.subr.bf16.mxu0 0
    %774 = vmatpush1.bf16.msra.mxu0 0
    %775 = vmatprep.subr.bf16.mxu0 0
    %776 = vmatpush1.bf16.msra.mxu0 0
    %777 = vmatprep.subr.bf16.mxu0 0
    %778 = vmatpush1.bf16.msra.mxu0 0
    %779 = vmatprep.subr.bf16.mxu0 0
    %780 = vmatpush1.bf16.msra.mxu0 0
    %781 = vmatprep.subr.bf16.mxu0 0
    %782 = vmatpush1.bf16.msra.mxu0 0
    %783 = vmatprep.subr.bf16.mxu0 0
    %784 = vmatpush1.bf16.msra.mxu0 0
    %785 = vmatprep.subr.bf16.mxu0 0
    %786 = vmatpush1.bf16.msra.mxu0 0
    %787 = vmatprep.subr.bf16.mxu0 0
    %788 = vmatpush1.bf16.msra.mxu0 0
    %789 = vmatprep.subr.bf16.mxu0 0
    %790 = vmatpush1.bf16.msra.mxu0 0
    %791 = vmatprep.mubr.bf16.mxu0 0
    %792 = vmatmul.mubr.bf16.gmra.mrb[0].mxu0 %v757
    %v793 = vpop.f32.mrb[0].mxu0
    %v794 = vadd.f32 0.0, %v793
    %v795 = vpop.f32.mrb[0].mxu0
    %v796 = vpop.f32.mrb[0].mxu0
    %v797 = vadd.f32 0.0, %v796
    %v798 = vpop.f32.mrb[0].mxu0
    %799 = vdwg.mxu0
    %v800 = vpack.c.bf16 %v797, %v794
    %v817 = vunpack.c.l.b16 %v129
    %v818 = vunpack.c.l.b16 %v130
    %v819 = vunpack.c.l.b16 %v131
    %v820 = vunpack.c.l.b16 %v132
    %v821 = vunpack.c.l.b16 %v133
    %v822 = vunpack.c.l.b16 %v134
    %v823 = vunpack.c.l.b16 %v135
    %v824 = vunpack.c.l.b16 %v136
    %v825 = vunpack.c.l.b16 %v137
    %v826 = vunpack.c.l.b16 %v138
    %v827 = vunpack.c.l.b16 %v139
    %v828 = vunpack.c.l.b16 %v140
    %v829 = vunpack.c.l.b16 %v141
    %v830 = vunpack.c.l.b16 %v142
    %v831 = vunpack.c.l.b16 %v143
    %v832 = vunpack.c.l.b16 %v144
    %v833 = vpack.c.b16 %v818, %v817
    %v834 = vpack.c.b16 %v820, %v819
    %v835 = vpack.c.b16 %v822, %v821
    %v836 = vpack.c.b16 %v824, %v823
    %v837 = vpack.c.b16 %v826, %v825
    %v838 = vpack.c.b16 %v828, %v827
    %v839 = vpack.c.b16 %v830, %v829
    %v840 = vpack.c.b16 %v832, %v831
    %849 = vmatprep.subr.bf16.mxu0 0
    %850 = vmatpush1.bf16.msra.mxu0 %v833
    %851 = vmatprep.subr.bf16.mxu0 0
    %852 = vmatpush1.bf16.msra.mxu0 %v834
    %853 = vmatprep.subr.bf16.mxu0 0
    %854 = vmatpush1.bf16.msra.mxu0 %v835
    %855 = vmatprep.subr.bf16.mxu0 0
    %856 = vmatpush1.bf16.msra.mxu0 %v836
    %857 = vmatprep.subr.bf16.mxu0 0
    %858 = vmatpush1.bf16.msra.mxu0 %v837
    %859 = vmatprep.subr.bf16.mxu0 0
    %860 = vmatpush1.bf16.msra.mxu0 %v838
    %861 = vmatprep.subr.bf16.mxu0 0
    %862 = vmatpush1.bf16.msra.mxu0 %v839
    %863 = vmatprep.subr.bf16.mxu0 0
    %864 = vmatpush1.bf16.msra.mxu0 %v840
    %865 = vmatprep.subr.bf16.mxu0 0
    %866 = vmatpush1.bf16.msra.mxu0 0
    %867 = vmatprep.subr.bf16.mxu0 0
    %868 = vmatpush1.bf16.msra.mxu0 0
    %869 = vmatprep.subr.bf16.mxu0 0
    %870 = vmatpush1.bf16.msra.mxu0 0
    %871 = vmatprep.subr.bf16.mxu0 0
    %872 = vmatpush1.bf16.msra.mxu0 0
    %873 = vmatprep.subr.bf16.mxu0 0
    %874 = vmatpush1.bf16.msra.mxu0 0
    %875 = vmatprep.subr.bf16.mxu0 0
    %876 = vmatpush1.bf16.msra.mxu0 0
    %877 = vmatprep.subr.bf16.mxu0 0
    %878 = vmatpush1.bf16.msra.mxu0 0
    %879 = vmatprep.subr.bf16.mxu0 0
    %880 = vmatpush1.bf16.msra.mxu0 0
    %881 = vmatprep.mubr.bf16.mxu0 0
    %882 = vmatmul.mubr.bf16.gmra.mrb[0].mxu0 %v800
    %v883 = vpop.f32.mrb[0].mxu0
    %v884 = vadd.f32 %v84, %v883
    %v885 = vpop.f32.mrb[0].mxu0
    %v886 = vpop.f32.mrb[0].mxu0
    %v887 = vadd.f32 %v84, %v886
    %v888 = vpop.f32.mrb[0].mxu0
    %889 = vdwg.mxu0
    %v890 = vadd.f32 %v419, %v884
    %v891 = vadd.f32 %v420, %v887
    %892 = vadd.xlane.f32.xlu0 %v890
    %v893 = vpop.xlane.xlu0 %892
    %894 = vadd.xlane.f32.xlu0 %v891
    %v895 = vpop.xlane.xlu0 %894
    %v896 = vmul.f32 %v893, %v398
    %v897 = vmul.f32 %v895, %v398
    %v898 = vsub.f32 %v890, %v896
    %v899 = vsub.f32 %v891, %v897
    %v900 = vmul.f32 %v898, %v898
    %v901 = vmul.f32 %v899, %v899
    %902 = vadd.xlane.f32.xlu0 %v900
    %v903 = vpop.xlane.xlu0 %902
    %904 = vadd.xlane.f32.xlu0 %v901
    %v905 = vpop.xlane.xlu0 %904
    %v906 = vmul.f32 %v903, %v398
    %v907 = vmul.f32 %v905, %v398
    %v908 = vadd.f32 %v906, 1e-12
    %v909 = vadd.f32 %v907, 1e-12
    %v910 = vrsqrt.pop %v908
    %v911 = vrsqrt.pop %v909
    %v912 = vmul.f32 %v898, %v910
    %v913 = vmul.f32 %v899, %v911
    %v914 = vmul.f32 %v912, %v85
    %v915 = vmul.f32 %v913, %v85
    %v916 = vadd.f32 %v914, %v86
    %v917 = vadd.f32 %v915, %v86
    %v918 = vpack.c.bf16 %v917, %v916
    %v920 = vlaneseq
    %v921 = vshrl.u32 %v920, 7
    %v922 = vsub.s32 0, %v921
    %v923 = vrot.slane %v88, %v922
    %v924 = vlaneseq
    %v925 = vshrl.u32 %v924, 7
    %v926 = vsub.s32 1, %v925
    %v927 = vrot.slane %v88, %v926
    %v946 = vunpack.c.l.b16 %v145
    %v947 = vunpack.c.h.b16 %v145
    %v948 = vunpack.c.l.b16 %v146
    %v949 = vunpack.c.h.b16 %v146
    %v950 = vunpack.c.l.b16 %v147
    %v951 = vunpack.c.h.b16 %v147
    %v952 = vunpack.c.l.b16 %v148
    %v953 = vunpack.c.h.b16 %v148
    %v954 = vunpack.c.l.b16 %v149
    %v955 = vunpack.c.h.b16 %v149
    %v956 = vunpack.c.l.b16 %v150
    %v957 = vunpack.c.h.b16 %v150
    %v958 = vunpack.c.l.b16 %v151
    %v959 = vunpack.c.h.b16 %v151
    %v960 = vunpack.c.l.b16 %v152
    %v961 = vunpack.c.h.b16 %v152
    %v962 = vunpack.c.l.b16 %v153
    %v963 = vunpack.c.h.b16 %v153
    %v964 = vunpack.c.l.b16 %v154
    %v965 = vunpack.c.h.b16 %v154
    %v966 = vunpack.c.l.b16 %v155
    %v967 = vunpack.c.h.b16 %v155
    %v968 = vunpack.c.l.b16 %v156
    %v969 = vunpack.c.h.b16 %v156
    %v970 = vunpack.c.l.b16 %v157
    %v971 = vunpack.c.h.b16 %v157
    %v972 = vunpack.c.l.b16 %v158
    %v973 = vunpack.c.h.b16 %v158
    %v974 = vunpack.c.l.b16 %v159
    %v975 = vunpack.c.h.b16 %v159
    %v976 = vunpack.c.l.b16 %v160
    %v977 = vunpack.c.h.b16 %v160
    %v978 = vpack.c.b16 %v948, %v946
    %v979 = vpack.c.b16 %v949, %v947
    %v980 = vpack.c.b16 %v952, %v950
    %v981 = vpack.c.b16 %v953, %v951
    %v982 = vpack.c.b16 %v956, %v954
    %v983 = vpack.c.b16 %v957, %v955
    %v984 = vpack.c.b16 %v960, %v958
    %v985 = vpack.c.b16 %v961, %v959
    %v986 = vpack.c.b16 %v964, %v962
    %v987 = vpack.c.b16 %v965, %v963
    %v988 = vpack.c.b16 %v968, %v966
    %v989 = vpack.c.b16 %v969, %v967
    %v990 = vpack.c.b16 %v972, %v970
    %v991 = vpack.c.b16 %v973, %v971
    %v992 = vpack.c.b16 %v976, %v974
    %v993 = vpack.c.b16 %v977, %v975
    %1010 = vmatprep.subr.bf16.mxu0 %v979
    %1011 = vmatpush1.bf16.msra.mxu0 %v978
    %1012 = vmatprep.subr.bf16.mxu0 %v981
    %1013 = vmatpush1.bf16.msra.mxu0 %v980
    %1014 = vmatprep.subr.bf16.mxu0 %v983
    %1015 = vmatpush1.bf16.msra.mxu0 %v982
    %1016 = vmatprep.subr.bf16.mxu0 %v985
    %1017 = vmatpush1.bf16.msra.mxu0 %v984
    %1018 = vmatprep.subr.bf16.mxu0 %v987
    %1019 = vmatpush1.bf16.msra.mxu0 %v986
    %1020 = vmatprep.subr.bf16.mxu0 %v989
    %1021 = vmatpush1.bf16.msra.mxu0 %v988
    %1022 = vmatprep.subr.bf16.mxu0 %v991
    %1023 = vmatpush1.bf16.msra.mxu0 %v990
    %1024 = vmatprep.subr.bf16.mxu0 %v993
    %1025 = vmatpush1.bf16.msra.mxu0 %v992
    %1026 = vmatprep.subr.bf16.mxu0 0
    %1027 = vmatpush1.bf16.msra.mxu0 0
    %1028 = vmatprep.subr.bf16.mxu0 0
    %1029 = vmatpush1.bf16.msra.mxu0 0
    %1030 = vmatprep.subr.bf16.mxu0 0
    %1031 = vmatpush1.bf16.msra.mxu0 0
    %1032 = vmatprep.subr.bf16.mxu0 0
    %1033 = vmatpush1.bf16.msra.mxu0 0
    %1034 = vmatprep.subr.bf16.mxu0 0
    %1035 = vmatpush1.bf16.msra.mxu0 0
    %1036 = vmatprep.subr.bf16.mxu0 0
    %1037 = vmatpush1.bf16.msra.mxu0 0
    %1038 = vmatprep.subr.bf16.mxu0 0
    %1039 = vmatpush1.bf16.msra.mxu0 0
    %1040 = vmatprep.subr.bf16.mxu0 0
    %1041 = vmatpush1.bf16.msra.mxu0 0
    %1042 = vmatprep.mubr.bf16.mxu0 0
    %1043 = vmatmul.mubr.bf16.gmra.mrb[0].mxu0 %v918
    %v1044 = vpop.f32.mrb[0].mxu0
    %v1045 = vadd.f32 %v923, %v1044
    %v1046 = vpop.f32.mrb[0].mxu0
    %v1047 = vadd.f32 %v927, %v1046
    %v1048 = vpop.f32.mrb[0].mxu0
    %v1049 = vadd.f32 %v923, %v1048
    %v1050 = vpop.f32.mrb[0].mxu0
    %v1051 = vadd.f32 %v927, %v1050
    %1052 = vdwg.mxu0
    %v1053 = vmul.f32 %v1045, %v1045
    %v1054 = vmul.f32 %v1047, %v1047
    %v1055 = vmul.f32 %v1049, %v1049
    %v1056 = vmul.f32 %v1051, %v1051
    %v1057 = vmul.f32 %v1045, %v1053
    %v1058 = vmul.f32 %v1047, %v1054
    %v1059 = vmul.f32 %v1049, %v1055
    %v1060 = vmul.f32 %v1051, %v1056
    %v1061 = vmul.f32 %v1057, 0.044715
    %v1062 = vmul.f32 %v1058, 0.044715
    %v1063 = vmul.f32 %v1059, 0.044715
    %v1064 = vmul.f32 %v1060, 0.044715
    %v1065 = vadd.f32 %v1045, %v1061
    %v1066 = vadd.f32 %v1047, %v1062
    %v1067 = vadd.f32 %v1049, %v1063
    %v1068 = vadd.f32 %v1051, %v1064
    %v1069 = vmul.f32 %v1065, 0.7978846
    %v1070 = vmul.f32 %v1066, 0.7978846
    %v1071 = vmul.f32 %v1067, 0.7978846
    %v1072 = vmul.f32 %v1068, 0.7978846
    %v1073 = vtanh.pop %v1069
    %v1074 = vtanh.pop %v1070
    %v1075 = vtanh.pop %v1071
    %v1076 = vtanh.pop %v1072
    %v1077 = vadd.f32 %v1073, 1.0
    %v1078 = vadd.f32 %v1074, 1.0
    %v1079 = vadd.f32 %v1075, 1.0
    %v1080 = vadd.f32 %v1076, 1.0
    %v1081 = vmul.f32 %v1077, 0.5
    %v1082 = vmul.f32 %v1078, 0.5
    %v1083 = vmul.f32 %v1079, 0.5
    %v1084 = vmul.f32 %v1080, 0.5
    %v1085 = vmul.f32 %v1045, %v1081
    %v1086 = vmul.f32 %v1047, %v1082
    %v1087 = vmul.f32 %v1049, %v1083
    %v1088 = vmul.f32 %v1051, %v1084
    %v1089 = vpack.c.bf16 %v1087, %v1085
    %v1090 = vpack.c.bf16 %v1088, %v1086
    %v1123 = vunpack.c.l.b16 %v193
    %v1124 = vunpack.c.l.b16 %v194
    %v1125 = vunpack.c.l.b16 %v195
    %v1126 = vunpack.c.l.b16 %v196
    %v1127 = vunpack.c.l.b16 %v197
    %v1128 = vunpack.c.l.b16 %v198
    %v1129 = vunpack.c.l.b16 %v199
    %v1130 = vunpack.c.l.b16 %v200
    %v1131 = vunpack.c.l.b16 %v201
    %v1132 = vunpack.c.l.b16 %v202
    %v1133 = vunpack.c.l.b16 %v203
    %v1134 = vunpack.c.l.b16 %v204
    %v1135 = vunpack.c.l.b16 %v205
    %v1136 = vunpack.c.l.b16 %v206
    %v1137 = vunpack.c.l.b16 %v207
    %v1138 = vunpack.c.l.b16 %v208
    %v1139 = vunpack.c.l.b16 %v209
    %v1140 = vunpack.c.l.b16 %v210
    %v1141 = vunpack.c.l.b16 %v211
    %v1142 = vunpack.c.l.b16 %v212
    %v1143 = vunpack.c.l.b16 %v213
    %v1144 = vunpack.c.l.b16 %v214
    %v1145 = vunpack.c.l.b16 %v215
    %v1146 = vunpack.c.l.b16 %v216
    %v1147 = vunpack.c.l.b16 %v217
    %v1148 = vunpack.c.l.b16 %v218
    %v1149 = vunpack.c.l.b16 %v219
    %v1150 = vunpack.c.l.b16 %v220
    %v1151 = vunpack.c.l.b16 %v221
    %v1152 = vunpack.c.l.b16 %v222
    %v1153 = vunpack.c.l.b16 %v223
    %v1154 = vunpack.c.l.b16 %v224
    %v1155 = vpack.c.b16 %v1124, %v1123
    %v1156 = vpack.c.b16 %v1126, %v1125
    %v1157 = vpack.c.b16 %v1128, %v1127
    %v1158 = vpack.c.b16 %v1130, %v1129
    %v1159 = vpack.c.b16 %v1132, %v1131
    %v1160 = vpack.c.b16 %v1134, %v1133
    %v1161 = vpack.c.b16 %v1136, %v1135
    %v1162 = vpack.c.b16 %v1138, %v1137
    %v1163 = vpack.c.b16 %v1140, %v1139
    %v1164 = vpack.c.b16 %v1142, %v1141
    %v1165 = vpack.c.b16 %v1144, %v1143
    %v1166 = vpack.c.b16 %v1146, %v1145
    %v1167 = vpack.c.b16 %v1148, %v1147
    %v1168 = vpack.c.b16 %v1150, %v1149
    %v1169 = vpack.c.b16 %v1152, %v1151
    %v1170 = vpack.c.b16 %v1154, %v1153
    %1187 = vmatprep.subr.bf16.mxu0 0
    %1188 = vmatpush1.bf16.msra.mxu0 %v1155
    %1189 = vmatprep.subr.bf16.mxu0 0
    %1190 = vmatpush1.bf16.msra.mxu0 %v1156
    %1191 = vmatprep.subr.bf16.mxu0 0
    %1192 = vmatpush1.bf16.msra.mxu0 %v1157
    %1193 = vmatprep.subr.bf16.mxu0 0
    %1194 = vmatpush1.bf16.msra.mxu0 %v1158
    %1195 = vmatprep.subr.bf16.mxu0 0
    %1196 = vmatpush1.bf16.msra.mxu0 %v1159
    %1197 = vmatprep.subr.bf16.mxu0 0
    %1198 = vmatpush1.bf16.msra.mxu0 %v1160
    %1199 = vmatprep.subr.bf16.mxu0 0
    %1200 = vmatpush1.bf16.msra.mxu0 %v1161
    %1201 = vmatprep.subr.bf16.mxu0 0
    %1202 = vmatpush1.bf16.msra.mxu0 %v1162
    %1203 = vmatprep.subr.bf16.mxu0 0
    %1204 = vmatpush1.bf16.msra.mxu0 %v1163
    %1205 = vmatprep.subr.bf16.mxu0 0
    %1206 = vmatpush1.bf16.msra.mxu0 %v1164
    %1207 = vmatprep.subr.bf16.mxu0 0
    %1208 = vmatpush1.bf16.msra.mxu0 %v1165
    %1209 = vmatprep.subr.bf16.mxu0 0
    %1210 = vmatpush1.bf16.msra.mxu0 %v1166
    %1211 = vmatprep.subr.bf16.mxu0 0
    %1212 = vmatpush1.bf16.msra.mxu0 %v1167
    %1213 = vmatprep.subr.bf16.mxu0 0
    %1214 = vmatpush1.bf16.msra.mxu0 %v1168
    %1215 = vmatprep.subr.bf16.mxu0 0
    %1216 = vmatpush1.bf16.msra.mxu0 %v1169
    %1217 = vmatprep.subr.bf16.mxu0 0
    %1218 = vmatpush1.bf16.msra.mxu0 %v1170
    %1219 = vmatprep.mubr.bf16.mxu0 %v1090
    %1220 = vmatmul.mubr.bf16.gmra.mrb[0].mxu0 %v1089
    %v1221 = vpop.f32.mrb[0].mxu0
    %v1222 = vadd.f32 %v89, %v1221
    %v1223 = vpop.f32.mrb[0].mxu0
    %v1224 = vpop.f32.mrb[0].mxu0
    %v1225 = vadd.f32 %v89, %v1224
    %v1226 = vpop.f32.mrb[0].mxu0
    %1227 = vdwg.mxu0
    %v1228 = vadd.f32 %v916, %v1222
    %v1229 = vadd.f32 %v917, %v1225
    %1230 = vadd.xlane.f32.xlu0 %v1228
    %v1231 = vpop.xlane.xlu0 %1230
    %1232 = vadd.xlane.f32.xlu0 %v1229
    %v1233 = vpop.xlane.xlu0 %1232
    %v1234 = vmul.f32 %v1231, %v398
    %v1235 = vmul.f32 %v1233, %v398
    %v1236 = vsub.f32 %v1228, %v1234
    %v1237 = vsub.f32 %v1229, %v1235
    %v1238 = vmul.f32 %v1236, %v1236
    %v1239 = vmul.f32 %v1237, %v1237
    %1240 = vadd.xlane.f32.xlu0 %v1238
    %v1241 = vpop.xlane.xlu0 %1240
    %1242 = vadd.xlane.f32.xlu0 %v1239
    %v1243 = vpop.xlane.xlu0 %1242
    %v1244 = vmul.f32 %v1241, %v398
    %v1245 = vmul.f32 %v1243, %v398
    %v1246 = vadd.f32 %v1244, 1e-12
    %v1247 = vadd.f32 %v1245, 1e-12
    %v1248 = vrsqrt.pop %v1246
    %v1249 = vrsqrt.pop %v1247
    %v1250 = vmul.f32 %v1236, %v1248
    %v1251 = vmul.f32 %v1237, %v1249
    %v1252 = vmul.f32 %v1250, %v90
    %v1253 = vmul.f32 %v1251, %v90
    %v1254 = vadd.f32 %v1252, %v91
    %v1255 = vadd.f32 %v1253, %v91
    %v1256 = vrot.slane %v1254, 4
    %v1257 = vmax.f32 %v1254, %v1256
    %v1258 = vrot.slane %v1257, 2
    %v1259 = vmax.f32 %v1257, %v1258
    %v1260 = vrot.slane %v1259, 1
    %v1261 = vmax.f32 %v1259, %v1260
    %v1262 = vrot.slane %v1255, 4
    %v1263 = vmax.f32 %v1255, %v1262
    %v1264 = vrot.slane %v1263, 2
    %v1265 = vmax.f32 %v1263, %v1264
    %v1266 = vrot.slane %v1265, 1
    %v1267 = vmax.f32 %v1265, %v1266
    %v1268 = vpack.c.bf16 %v1261, %v1261
    %v1269 = vpack.c.bf16 %v1267, %v1267
    %v1271 = vlaneseq
    %v1272 = vshrl.u32 %v1271, 7
    %v1273 = vsub.s32 0, %v1272
    %v1274 = vrot.slane %v93, %v1273
    %v1275 = vlaneseq
    %v1276 = vshrl.u32 %v1275, 7
    %v1277 = vsub.s32 1, %v1276
    %v1278 = vrot.slane %v93, %v1277
    %v1279 = vlaneseq
    %v1280 = vshrl.u32 %v1279, 7
    %v1281 = vsub.s32 2, %v1280
    %v1282 = vrot.slane %v93, %v1281
    %v1288 = vunpack.c.l.b16 %v1268
    %v1289 = vunpack.c.l.b16 %v1269
    %vm1290 = vcmask 1041409
    %v1291 = vsel %vm1290, %v1289, %v1288
    %v1292 = vpack.c.b16 %v1291, %v1291
    %v1326 = vunpack.c.l.b16 %v161
    %v1327 = vunpack.c.h.b16 %v161
    %v1328 = vunpack.c.l.b16 %v162
    %v1329 = vunpack.c.l.b16 %v163
    %v1330 = vunpack.c.h.b16 %v163
    %v1331 = vunpack.c.l.b16 %v164
    %v1332 = vunpack.c.l.b16 %v165
    %v1333 = vunpack.c.h.b16 %v165
    %v1334 = vunpack.c.l.b16 %v166
    %v1335 = vunpack.c.l.b16 %v167
    %v1336 = vunpack.c.h.b16 %v167
    %v1337 = vunpack.c.l.b16 %v168
    %v1338 = vunpack.c.l.b16 %v169
    %v1339 = vunpack.c.h.b16 %v169
    %v1340 = vunpack.c.l.b16 %v170
    %v1341 = vunpack.c.l.b16 %v171
    %v1342 = vunpack.c.h.b16 %v171
    %v1343 = vunpack.c.l.b16 %v172
    %v1344 = vunpack.c.l.b16 %v173
    %v1345 = vunpack.c.h.b16 %v173
    %v1346 = vunpack.c.l.b16 %v174
    %v1347 = vunpack.c.l.b16 %v175
    %v1348 = vunpack.c.h.b16 %v175
    %v1349 = vunpack.c.l.b16 %v176
    %v1350 = vunpack.c.l.b16 %v177
    %v1351 = vunpack.c.h.b16 %v177
    %v1352 = vunpack.c.l.b16 %v178
    %v1353 = vunpack.c.l.b16 %v179
    %v1354 = vunpack.c.h.b16 %v179
    %v1355 = vunpack.c.l.b16 %v180
    %v1356 = vunpack.c.l.b16 %v181
    %v1357 = vunpack.c.h.b16 %v181
    %v1358 = vunpack.c.l.b16 %v182
    %v1359 = vunpack.c.l.b16 %v183
    %v1360 = vunpack.c.h.b16 %v183
    %v1361 = vunpack.c.l.b16 %v184
    %v1362 = vunpack.c.l.b16 %v185
    %v1363 = vunpack.c.h.b16 %v185
    %v1364 = vunpack.c.l.b16 %v186
    %v1365 = vunpack.c.l.b16 %v187
    %v1366 = vunpack.c.h.b16 %v187
    %v1367 = vunpack.c.l.b16 %v188
    %v1368 = vunpack.c.l.b16 %v189
    %v1369 = vunpack.c.h.b16 %v189
    %v1370 = vunpack.c.l.b16 %v190
    %v1371 = vunpack.c.l.b16 %v191
    %v1372 = vunpack.c.h.b16 %v191
    %v1373 = vunpack.c.l.b16 %v192
    %v1374 = vpack.c.b16 %v1329, %v1326
    %v1375 = vpack.c.b16 %v1330, %v1327
    %v1376 = vpack.c.b16 %v1331, %v1328
    %v1377 = vpack.c.b16 %v1335, %v1332
    %v1378 = vpack.c.b16 %v1336, %v1333
    %v1379 = vpack.c.b16 %v1337, %v1334
    %v1380 = vpack.c.b16 %v1341, %v1338
    %v1381 = vpack.c.b16 %v1342, %v1339
    %v1382 = vpack.c.b16 %v1343, %v1340
    %v1383 = vpack.c.b16 %v1347, %v1344
    %v1384 = vpack.c.b16 %v1348, %v1345
    %v1385 = vpack.c.b16 %v1349, %v1346
    %v1386 = vpack.c.b16 %v1353, %v1350
    %v1387 = vpack.c.b16 %v1354, %v1351
    %v1388 = vpack.c.b16 %v1355, %v1352
    %v1389 = vpack.c.b16 %v1359, %v1356
    %v1390 = vpack.c.b16 %v1360, %v1357
    %v1391 = vpack.c.b16 %v1361, %v1358
    %v1392 = vpack.c.b16 %v1365, %v1362
    %v1393 = vpack.c.b16 %v1366, %v1363
    %v1394 = vpack.c.b16 %v1367, %v1364
    %v1395 = vpack.c.b16 %v1371, %v1368
    %v1396 = vpack.c.b16 %v1372, %v1369
    %v1397 = vpack.c.b16 %v1373, %v1370
    %1422 = vmatprep.subr.bf16.mxu0 %v1375
    %1423 = vmatpush1.bf16.msra.mxu0 %v1374
    %1424 = vmatprep.subr.bf16.mxu0 %v1378
    %1425 = vmatpush1.bf16.msra.mxu0 %v1377
    %1426 = vmatprep.subr.bf16.mxu0 %v1381
    %1427 = vmatpush1.bf16.msra.mxu0 %v1380
    %1428 = vmatprep.subr.bf16.mxu0 %v1384
    %1429 = vmatpush1.bf16.msra.mxu0 %v1383
    %1430 = vmatprep.subr.bf16.mxu0 %v1387
    %1431 = vmatpush1.bf16.msra.mxu0 %v1386
    %1432 = vmatprep.subr.bf16.mxu0 %v1390
    %1433 = vmatpush1.bf16.msra.mxu0 %v1389
    %1434 = vmatprep.subr.bf16.mxu0 %v1393
    %1435 = vmatpush1.bf16.msra.mxu0 %v1392
    %1436 = vmatprep.subr.bf16.mxu0 %v1396
    %1437 = vmatpush1.bf16.msra.mxu0 %v1395
    %1438 = vmatprep.subr.bf16.mxu0 0
    %1439 = vmatpush1.bf16.msra.mxu0 0
    %1440 = vmatprep.subr.bf16.mxu0 0
    %1441 = vmatpush1.bf16.msra.mxu0 0
    %1442 = vmatprep.subr.bf16.mxu0 0
    %1443 = vmatpush1.bf16.msra.mxu0 0
    %1444 = vmatprep.subr.bf16.mxu0 0
    %1445 = vmatpush1.bf16.msra.mxu0 0
    %1446 = vmatprep.subr.bf16.mxu0 0
    %1447 = vmatpush1.bf16.msra.mxu0 0
    %1448 = vmatprep.subr.bf16.mxu0 0
    %1449 = vmatpush1.bf16.msra.mxu0 0
    %1450 = vmatprep.subr.bf16.mxu0 0
    %1451 = vmatpush1.bf16.msra.mxu0 0
    %1452 = vmatprep.subr.bf16.mxu0 0
    %1453 = vmatpush1.bf16.msra.mxu0 0
    %1454 = vmatprep.mubr.bf16.mxu0 0
    %1455 = vmatmul.mubr.bf16.gmra.mrb[0].mxu0 %v1292
    %v1456 = vpop.f32.mrb[0].mxu0
    %v1457 = vadd.f32 %v1274, %v1456
    %v1458 = vpop.f32.mrb[0].mxu0
    %v1459 = vadd.f32 %v1278, %v1458
    %v1460 = vpop.f32.mrb[0].mxu0
    %v1461 = vpop.f32.mrb[0].mxu0
    %1462 = vdwg.mxu0
    %1463 = vmatprep.subr.bf16.mxu0 0
    %1464 = vmatpush1.bf16.msra.mxu0 %v1376
    %1465 = vmatprep.subr.bf16.mxu0 0
    %1466 = vmatpush1.bf16.msra.mxu0 %v1379
    %1467 = vmatprep.subr.bf16.mxu0 0
    %1468 = vmatpush1.bf16.msra.mxu0 %v1382
    %1469 = vmatprep.subr.bf16.mxu0 0
    %1470 = vmatpush1.bf16.msra.mxu0 %v1385
    %1471 = vmatprep.subr.bf16.mxu0 0
    %1472 = vmatpush1.bf16.msra.mxu0 %v1388
    %1473 = vmatprep.subr.bf16.mxu0 0
    %1474 = vmatpush1.bf16.msra.mxu0 %v1391
    %1475 = vmatprep.subr.bf16.mxu0 0
    %1476 = vmatpush1.bf16.msra.mxu0 %v1394
    %1477 = vmatprep.subr.bf16.mxu0 0
    %1478 = vmatpush1.bf16.msra.mxu0 %v1397
    %1479 = vmatprep.subr.bf16.mxu0 0
    %1480 = vmatpush1.bf16.msra.mxu0 0
    %1481 = vmatprep.subr.bf16.mxu0 0
    %1482 = vmatpush1.bf16.msra.mxu0 0
    %1483 = vmatprep.subr.bf16.mxu0 0
    %1484 = vmatpush1.bf16.msra.mxu0 0
    %1485 = vmatprep.subr.bf16.mxu0 0
    %1486 = vmatpush1.bf16.msra.mxu0 0
    %1487 = vmatprep.subr.bf16.mxu0 0
    %1488 = vmatpush1.bf16.msra.mxu0 0
    %1489 = vmatprep.subr.bf16.mxu0 0
    %1490 = vmatpush1.bf16.msra.mxu0 0
    %1491 = vmatprep.subr.bf16.mxu0 0
    %1492 = vmatpush1.bf16.msra.mxu0 0
    %1493 = vmatprep.subr.bf16.mxu0 0
    %1494 = vmatpush1.bf16.msra.mxu0 0
    %1495 = vmatprep.mubr.bf16.mxu0 0
    %1496 = vmatmul.mubr.bf16.gmra.mrb[0].mxu0 %v1292
    %v1497 = vpop.f32.mrb[0].mxu0
    %v1498 = vadd.f32 %v1282, %v1497
    %v1499 = vpop.f32.mrb[0].mxu0
    %v1500 = vpop.f32.mrb[0].mxu0
    %v1501 = vpop.f32.mrb[0].mxu0
    %1502 = vdwg.mxu0
    %v1503 = vmax.f32 %v1457, 0.0
    %v1504 = vmax.f32 %v1459, 0.0
    %v1505 = vmax.f32 %v1498, 0.0
    %v1506 = vpack.c.bf16 %v1503, %v1503
    %v1507 = vpack.c.bf16 %v1504, %v1504
    %v1508 = vpack.c.bf16 %v1505, %v1505
    %v1557 = vunpack.c.l.b16 %v225
    %v1558 = vunpack.c.l.b16 %v226
    %v1559 = vunpack.c.l.b16 %v227
    %v1560 = vunpack.c.l.b16 %v228
    %v1561 = vunpack.c.l.b16 %v229
    %v1562 = vunpack.c.l.b16 %v230
    %v1563 = vunpack.c.l.b16 %v231
    %v1564 = vunpack.c.l.b16 %v232
    %v1565 = vunpack.c.l.b16 %v233
    %v1566 = vunpack.c.l.b16 %v234
    %v1567 = vunpack.c.l.b16 %v235
    %v1568 = vunpack.c.l.b16 %v236
    %v1569 = vunpack.c.l.b16 %v237
    %v1570 = vunpack.c.l.b16 %v238
    %v1571 = vunpack.c.l.b16 %v239
    %v1572 = vunpack.c.l.b16 %v240
    %v1573 = vunpack.c.l.b16 %v241
    %v1574 = vunpack.c.l.b16 %v242
    %v1575 = vunpack.c.l.b16 %v243
    %v1576 = vunpack.c.l.b16 %v244
    %v1577 = vunpack.c.l.b16 %v245
    %v1578 = vunpack.c.l.b16 %v246
    %v1579 = vunpack.c.l.b16 %v247
    %v1580 = vunpack.c.l.b16 %v248
    %v1581 = vunpack.c.l.b16 %v249
    %v1582 = vunpack.c.l.b16 %v250
    %v1583 = vunpack.c.l.b16 %v251
    %v1584 = vunpack.c.l.b16 %v252
    %v1585 = vunpack.c.l.b16 %v253
    %v1586 = vunpack.c.l.b16 %v254
    %v1587 = vunpack.c.l.b16 %v255
    %v1588 = vunpack.c.l.b16 %v256
    %v1589 = vunpack.c.l.b16 %v257
    %v1590 = vunpack.c.l.b16 %v258
    %v1591 = vunpack.c.l.b16 %v259
    %v1592 = vunpack.c.l.b16 %v260
    %v1593 = vunpack.c.l.b16 %v261
    %v1594 = vunpack.c.l.b16 %v262
    %v1595 = vunpack.c.l.b16 %v263
    %v1596 = vunpack.c.l.b16 %v264
    %v1597 = vunpack.c.l.b16 %v265
    %v1598 = vunpack.c.l.b16 %v266
    %v1599 = vunpack.c.l.b16 %v267
    %v1600 = vunpack.c.l.b16 %v268
    %v1601 = vunpack.c.l.b16 %v269
    %v1602 = vunpack.c.l.b16 %v270
    %v1603 = vunpack.c.l.b16 %v271
    %v1604 = vunpack.c.l.b16 %v272
    %v1605 = vpack.c.b16 %v1558, %v1557
    %v1606 = vpack.c.b16 %v1560, %v1559
    %v1607 = vpack.c.b16 %v1562, %v1561
    %v1608 = vpack.c.b16 %v1564, %v1563
    %v1609 = vpack.c.b16 %v1566, %v1565
    %v1610 = vpack.c.b16 %v1568, %v1567
    %v1611 = vpack.c.b16 %v1570, %v1569
    %v1612 = vpack.c.b16 %v1572, %v1571
    %v1613 = vpack.c.b16 %v1574, %v1573
    %v1614 = vpack.c.b16 %v1576, %v1575
    %v1615 = vpack.c.b16 %v1578, %v1577
    %v1616 = vpack.c.b16 %v1580, %v1579
    %v1617 = vpack.c.b16 %v1582, %v1581
    %v1618 = vpack.c.b16 %v1584, %v1583
    %v1619 = vpack.c.b16 %v1586, %v1585
    %v1620 = vpack.c.b16 %v1588, %v1587
    %v1621 = vpack.c.b16 %v1590, %v1589
    %v1622 = vpack.c.b16 %v1592, %v1591
    %v1623 = vpack.c.b16 %v1594, %v1593
    %v1624 = vpack.c.b16 %v1596, %v1595
    %v1625 = vpack.c.b16 %v1598, %v1597
    %v1626 = vpack.c.b16 %v1600, %v1599
    %v1627 = vpack.c.b16 %v1602, %v1601
    %v1628 = vpack.c.b16 %v1604, %v1603
    %1653 = vmatprep.subr.bf16.mxu0 0
    %1654 = vmatpush1.bf16.msra.mxu0 %v1605
    %1655 = vmatprep.subr.bf16.mxu0 0
    %1656 = vmatpush1.bf16.msra.mxu0 %v1606
    %1657 = vmatprep.subr.bf16.mxu0 0
    %1658 = vmatpush1.bf16.msra.mxu0 %v1607
    %1659 = vmatprep.subr.bf16.mxu0 0
    %1660 = vmatpush1.bf16.msra.mxu0 %v1608
    %1661 = vmatprep.subr.bf16.mxu0 0
    %1662 = vmatpush1.bf16.msra.mxu0 %v1609
    %1663 = vmatprep.subr.bf16.mxu0 0
    %1664 = vmatpush1.bf16.msra.mxu0 %v1610
    %1665 = vmatprep.subr.bf16.mxu0 0
    %1666 = vmatpush1.bf16.msra.mxu0 %v1611
    %1667 = vmatprep.subr.bf16.mxu0 0
    %1668 = vmatpush1.bf16.msra.mxu0 %v1612
    %1669 = vmatprep.subr.bf16.mxu0 0
    %1670 = vmatpush1.bf16.msra.mxu0 %v1613
    %1671 = vmatprep.subr.bf16.mxu0 0
    %1672 = vmatpush1.bf16.msra.mxu0 %v1614
    %1673 = vmatprep.subr.bf16.mxu0 0
    %1674 = vmatpush1.bf16.msra.mxu0 %v1615
    %1675 = vmatprep.subr.bf16.mxu0 0
    %1676 = vmatpush1.bf16.msra.mxu0 %v1616
    %1677 = vmatprep.subr.bf16.mxu0 0
    %1678 = vmatpush1.bf16.msra.mxu0 %v1617
    %1679 = vmatprep.subr.bf16.mxu0 0
    %1680 = vmatpush1.bf16.msra.mxu0 %v1618
    %1681 = vmatprep.subr.bf16.mxu0 0
    %1682 = vmatpush1.bf16.msra.mxu0 %v1619
    %1683 = vmatprep.subr.bf16.mxu0 0
    %1684 = vmatpush1.bf16.msra.mxu0 %v1620
    %1685 = vmatprep.mubr.bf16.mxu0 %v1507
    %1686 = vmatmul.mubr.bf16.gmra.mrb[0].mxu0 %v1506
    %v1687 = vpop.f32.mrb[0].mxu0
    %v1688 = vadd.f32 %v94, %v1687
    %v1689 = vpop.f32.mrb[0].mxu0
    %v1690 = vpop.f32.mrb[0].mxu0
    %v1691 = vpop.f32.mrb[0].mxu0
    %1692 = vdwg.mxu0
    %1693 = vmatprep.subr.bf16.mxu0 0
    %1694 = vmatpush1.bf16.msra.mxu0 %v1621
    %1695 = vmatprep.subr.bf16.mxu0 0
    %1696 = vmatpush1.bf16.msra.mxu0 %v1622
    %1697 = vmatprep.subr.bf16.mxu0 0
    %1698 = vmatpush1.bf16.msra.mxu0 %v1623
    %1699 = vmatprep.subr.bf16.mxu0 0
    %1700 = vmatpush1.bf16.msra.mxu0 %v1624
    %1701 = vmatprep.subr.bf16.mxu0 0
    %1702 = vmatpush1.bf16.msra.mxu0 %v1625
    %1703 = vmatprep.subr.bf16.mxu0 0
    %1704 = vmatpush1.bf16.msra.mxu0 %v1626
    %1705 = vmatprep.subr.bf16.mxu0 0
    %1706 = vmatpush1.bf16.msra.mxu0 %v1627
    %1707 = vmatprep.subr.bf16.mxu0 0
    %1708 = vmatpush1.bf16.msra.mxu0 %v1628
    %1709 = vmatprep.subr.bf16.mxu0 0
    %1710 = vmatpush1.bf16.msra.mxu0 0
    %1711 = vmatprep.subr.bf16.mxu0 0
    %1712 = vmatpush1.bf16.msra.mxu0 0
    %1713 = vmatprep.subr.bf16.mxu0 0
    %1714 = vmatpush1.bf16.msra.mxu0 0
    %1715 = vmatprep.subr.bf16.mxu0 0
    %1716 = vmatpush1.bf16.msra.mxu0 0
    %1717 = vmatprep.subr.bf16.mxu0 0
    %1718 = vmatpush1.bf16.msra.mxu0 0
    %1719 = vmatprep.subr.bf16.mxu0 0
    %1720 = vmatpush1.bf16.msra.mxu0 0
    %1721 = vmatprep.subr.bf16.mxu0 0
    %1722 = vmatpush1.bf16.msra.mxu0 0
    %1723 = vmatprep.subr.bf16.mxu0 0
    %1724 = vmatpush1.bf16.msra.mxu0 0
    %1725 = vmatprep.mubr.bf16.mxu0 0
    %1726 = vmatmul.mubr.bf16.gmra.mrb[0].mxu0 %v1508
    %v1727 = vpop.f32.mrb[0].mxu0
    %v1728 = vadd.f32 %v1688, %v1727
    %v1729 = vpop.f32.mrb[0].mxu0
    %v1730 = vpop.f32.mrb[0].mxu0
    %v1731 = vpop.f32.mrb[0].mxu0
    %1732 = vdwg.mxu0
    %1733 = vst [vmem:[#allocation10] sm:$0x3] %v1728
    // Predicated region
    $region46: #{tpu_custom_call.1} parent=1 // pred_check
      _
    $region47: #{tpu_custom_call.1} parent=1 // pred_check_branch
      %1735 = sbr.rel (0) target = $region49
    $region48: #{tpu_custom_call.1} parent=1 // pred_region
      %s1737 = ssub.s32 32, 32
      %1738 = vsyncadd [#allocation4], %s1737
      %s1740 = sshll.u32 [#allocation10], 4
      %s1741 = int_to_ptr.vmem [resolvable:$true] %s1740
      %1743 = dma.vmem_to_hbm [thread:$0]  %s1741, 32, %s7, [#allocation4]
    $region49: #{tpu_custom_call.1} parent=1 // pred_fallthru
      _
    // Predicated region
    $region50: #{tpu_custom_call.1} parent=1 // pred_check
      _
    $region51: #{tpu_custom_call.1} parent=1 // pred_check_branch
      %1745 = sbr.rel (0) target = $region53
    $region52: #{tpu_custom_call.1} parent=1 // pred_region
      %1746 = dma.done [#allocation4], 32
    $region53: #{tpu_custom_call.1} parent=1 // pred_fallthru
      _
    %1747 = vsyncpa [#allocation3], 1
    %1748 = vsyncpa [#allocation6], 1
    %1749 = vsyncpa [#allocation9], 1
    %1750 = vsyncpa [#allocation4], 1

</llo_original>
